<compile_context>
chip_gen: v7x
topology: tpu7x:2x2x1
jax: 0.10.0
libtpu: 0.0.40
codegen_flags: <defaults>
</compile_context>

<pallas_src>
import functools

import jax
import jax.numpy as jnp
from jax import lax
from jax.experimental import pallas as pl
from jax.experimental.pallas import tpu as pltpu

LANES = 128


# --------------------------- Fused AT-LSTM kernel ----------------------------
def at_lstm_kernel(data_ref, w_ref, out_ref, hs_ref, *, B, S, A, H, E, off):
    f32 = jnp.float32
    N = B * S

    # ---- weights: each loaded exactly once (hoisted above the recurrence) ----
    w_ih = w_ref[off["wih"]:off["wih"] + E, :]            # (E, 128)  gates i,f,o,g
    w_hh = w_ref[off["whh"]:off["whh"] + H, :]            # (H, 128)
    b_l = w_ref[off["bl"]:off["bl"] + 1, :]               # (1, 128)

    # ---- LSTM input projection for ALL timesteps as one GEMM, time-major ----
    xt = data_ref[0:N, :]                                  # (S*B, E) time-major
    xg = jnp.dot(xt, w_ih, preferred_element_type=f32) + b_l   # (S*B, 4H)

    # ---- serial recurrence, fully unrolled; only h @ W_hh on the chain ----
    # TODO(synk): on v5e, W_hh could be held weight-stationary in the MXU
    #             (pltpu.matmul_push_rhs once, matmul_acc_lhs per unrolled step).
    h = jnp.zeros((B, H), f32)
    c = jnp.zeros((B, H), f32)
    for t in range(S):
        g_all = xg[t * B:(t + 1) * B, :] + jnp.dot(h, w_hh, preferred_element_type=f32)
        sig = jax.nn.sigmoid(g_all[:, 0:3 * H])            # i | f | o, one EUP launch
        c = sig[:, H:2 * H] * c + sig[:, 0:H] * jnp.tanh(g_all[:, 3 * H:4 * H])
        h = sig[:, 2 * H:3 * H] * jnp.tanh(c)
        for b in range(B):                                  # vst slot, off the chain
            hs_ref[b * S + t:b * S + t + 1, :] = h[b:b + 1, :]

    # ---- length masking: one vectorized multiply (mask precomputed in wrapper) ----
    mask = data_ref[N + B * A:N + B * A + N, :]             # (B*S, H) batch-major
    hs = hs_ref[...] * mask                                  # masked lstm_out

    # ---- attention + output projection (w_k @ w_proj folded into w_kp) ----
    w_kp = w_ref[off["wkp"]:off["wkp"] + H, :]               # (H, 128) = w_k @ w_proj_pad
    b_kp = w_ref[off["bkp"]:off["bkp"] + 1, :]               # (1, 128) = b_k @ w_proj_pad
    b_pr = w_ref[off["bpr"]:off["bpr"] + 1, :]               # (1, 128) = b_proj (padded)
    kp = jnp.dot(hs, w_kp, preferred_element_type=f32) + b_kp    # (B*S, 128)

    vk_row = w_ref[off["vk"]:off["vk"] + 1, :]               # lanes[:H]=w_k@w1, lane[H]=bias
    vq_row = w_ref[off["vq"]:off["vq"] + 1, :]               # lanes[:H]=w_q@w2
    v_k, c_s = vk_row[:, 0:H], vk_row[:, H:H + 1]
    v_q = vq_row[:, 0:H]

    # score pieces for ALL batches at once; sk lanes are batch-major (b*S + t)
    sk = lax.dot_general(v_k, hs, (((1,), (1,)), ((), ())),
                         preferred_element_type=f32)          # (1, B*S)
    asp = data_ref[N:N + B * A, :]                            # (B*A, E)
    sq = lax.dot_general(asp, v_q, (((1,), (1,)), ((), ())),
                         preferred_element_type=f32)          # (B*A, 1)

    # tiny per-batch softmax + context; output stores are 128-lane dense
    for b in range(B):
        score = jnp.tanh(sq[b * A:(b + 1) * A, :] + sk[:, b * S:(b + 1) * S] + c_s)  # (A, S)
        e = jnp.exp(score)                                    # tanh-bounded: no max-subtract
        p = e / jnp.sum(e, axis=-1, keepdims=True)
        out_ref[b * A:(b + 1) * A, :] = (
            jnp.dot(p, kp[b * S:(b + 1) * S, :], preferred_element_type=f32) + b_pr)


# ----------------------- One-time weight folding/packing ----------------------
def pack_weights(params):
    """Fold, reorder and lane-pad every weight into one (rows, 128) f32 blob."""
    E = params["w_ih_t"].shape[0]
    H = params["w_hh_t"].shape[0]
    P = params["w_proj"].shape[1]
    assert 4 * H <= LANES and H + 1 <= LANES and P <= LANES

    def pad_lanes(w):
        return jnp.pad(w.astype(jnp.float32), ((0, 0), (0, LANES - w.shape[1])))

    def reorder_gates(w):                                    # (i,f,g,o) -> (i,f,o,g)
        return jnp.concatenate([w[:, :2 * H], w[:, 3 * H:4 * H], w[:, 2 * H:3 * H]], axis=-1)

    w_ih = pad_lanes(reorder_gates(params["w_ih_t"]))        # (E, 128)
    w_hh = pad_lanes(reorder_gates(params["w_hh_t"]))        # (H, 128)
    b_l = pad_lanes(reorder_gates(params["b_lstm"]))         # (1, 128)

    # MLP-score folds:  kx@w1 = hs@(w_k@w1) + b_k@w1 ;  qx@w2 = asp@(w_q@w2) + b_q@w2
    v_k = params["w_k"] @ params["w1"]                        # (H, 1)
    v_q = params["w_q"] @ params["w2"]                        # (H, 1)
    c_s = params["b_k"] @ params["w1"] + params["b_q"] @ params["w2"]   # (1, 1)
    vk_row = pad_lanes(jnp.concatenate([v_k.T, c_s], axis=1))
    vq_row = pad_lanes(v_q.T)

    # Output-projection fold: (p @ kx) @ w_proj = p @ (hs @ (w_k@w_proj) + b_k@w_proj)
    w_proj_pad = pad_lanes(params["w_proj"])                  # (H, 128)
    w_kp = params["w_k"] @ w_proj_pad                         # (H, 128)
    b_kp = params["b_k"] @ w_proj_pad                         # (1, 128)
    b_pr = pad_lanes(params["b_proj"])                        # (1, 128)

    rows = [w_ih, w_hh, b_l, vk_row, vq_row]
    n = E + H + 3
    pad = (-n) % 8                                            # keep GEMM operands 8-aligned
    if pad:
        rows.append(jnp.zeros((pad, LANES), jnp.float32))
    r_wkp = n + pad
    rows += [w_kp, b_kp, b_pr]
    n = r_wkp + H + 2
    pad = (-n) % 8
    if pad:
        rows.append(jnp.zeros((pad, LANES), jnp.float32))
    blob = jnp.concatenate(rows, axis=0)

    off = dict(wih=0, whh=E, bl=E + H, vk=E + H + 1, vq=E + H + 2,
               wkp=r_wkp, bkp=r_wkp + H, bpr=r_wkp + H + 1)
    return blob, off


# ------------------------------ Forward builder --------------------------------
def build_at_lstm(params):
    w_blob, off = pack_weights(params)
    emb = params["embedding"]
    E = params["w_ih_t"].shape[0]
    H = params["w_hh_t"].shape[0]
    P = params["w_proj"].shape[1]
    assert E == H, "Attention(opt.hidden_dim) applied to embeddings requires E == H"

    @jax.jit
    def forward(text_indices, aspect_indices):
        B, S = text_indices.shape
        A = aspect_indices.shape[1]
        x = emb[text_indices]                                  # (B, S, E)
        asp = emb[aspect_indices]                              # (B, A, E)
        x_len = jnp.sum(text_indices != 0, axis=-1)
        # TODO(synk): torch pad_packed_sequence truncates lstm_out to max(x_len); we
        #             assume max(x_len) == S (true for the test batch below).
        xt = jnp.transpose(x, (1, 0, 2)).reshape(S * B, E)     # time-major
        asp_flat = asp.reshape(B * A, E)
        mask = (jnp.arange(S)[None, :] < x_len[:, None]).astype(jnp.float32)   # (B, S)
        mask = jnp.broadcast_to(mask.reshape(B * S, 1), (B * S, E))            # batch-major
        data = jnp.concatenate([xt, asp_flat, mask], axis=0)   # (S*B + B*A + B*S, E)

        vmem = pl.BlockSpec(memory_space=pltpu.MemorySpace.VMEM)
        out_flat = pl.pallas_call(
            functools.partial(at_lstm_kernel, B=B, S=S, A=A, H=H, E=E, off=off),
            out_shape=jax.ShapeDtypeStruct((B * A, LANES), jnp.float32),
            in_specs=[vmem, vmem],
            out_specs=vmem,
            scratch_shapes=[pltpu.VMEM((B * S, H), jnp.float32)],
        )(data, w_blob)
        out = out_flat[:, :P].reshape(B, A, P)
        return jnp.squeeze(out)                                # torch.squeeze(out)

    return forward


# -------------------------- Pure-JAX reference -------------------------------
def reference_forward(params, text_indices, aspect_indices):
    emb = params["embedding"]
    x = emb[text_indices]
    aspect = emb[aspect_indices]
    x_len = jnp.sum(text_indices != 0, axis=-1)
    B, S, _ = x.shape
    H = params["w_hh_t"].shape[0]

    def step(carry, xt):
        h, c = carry
        gates = xt @ params["w_ih_t"] + h @ params["w_hh_t"] + params["b_lstm"]
        i = jax.nn.sigmoid(gates[:, :H])
        f = jax.nn.sigmoid(gates[:, H:2 * H])
        g = jnp.tanh(gates[:, 2 * H:3 * H])
        o = jax.nn.sigmoid(gates[:, 3 * H:])
        c = f * c + i * g
        h = o * jnp.tanh(c)
        return (h, c), h

    init = (jnp.zeros((B, H), jnp.float32), jnp.zeros((B, H), jnp.float32))
    _, hs = lax.scan(step, init, jnp.transpose(x, (1, 0, 2)))
    lstm_out = jnp.transpose(hs, (1, 0, 2))
    mask = jnp.arange(S)[None, :, None] < x_len[:, None, None]
    lstm_out = jnp.where(mask, lstm_out, 0.0)

    kx = lstm_out @ params["w_k"] + params["b_k"]
    qx = aspect @ params["w_q"] + params["b_q"]
    score = jnp.tanh((qx @ params["w2"]) + jnp.transpose(kx @ params["w1"], (0, 2, 1)))
    score = jax.nn.softmax(score, axis=-1)
    out = score @ kx
    out = out @ params["w_proj"] + params["b_proj"]
    return jnp.squeeze(out)


# ------------------------------ Setup -----------------------------------------
def make_params(key, vocab, embed_dim, hidden_dim, polarities_dim):
    ks = jax.random.split(key, 10)
    u = lambda k, shape, s: jax.random.uniform(k, shape, jnp.float32, -s, s)
    sH = 1.0 / jnp.sqrt(hidden_dim)
    return {
        "embedding": jax.random.normal(ks[0], (vocab, embed_dim), jnp.float32),
        # nn.LSTM weights, stored transposed as (in, 4H); gate order i,f,g,o
        "w_ih_t": u(ks[1], (embed_dim, 4 * hidden_dim), sH),
        "w_hh_t": u(ks[2], (hidden_dim, 4 * hidden_dim), sH),
        "b_lstm": u(ks[3], (1, 4 * hidden_dim), sH),          # b_ih + b_hh combined
        # Attention: w_k, w_q Linear(H,H) stored as (in,out); MLP weight (2H,) split
        "w_k": u(ks[4], (hidden_dim, hidden_dim), sH),
        "b_k": u(ks[5], (1, hidden_dim), sH),
        "w_q": u(ks[6], (hidden_dim, hidden_dim), sH),
        "b_q": u(ks[7], (1, hidden_dim), sH),
        "w1": u(ks[8], (hidden_dim, 1), sH),                   # weight[:H]  (applied to kx)
        "w2": u(ks[8], (hidden_dim, 1), sH) * 0.7,             # weight[H:]  (applied to qx)
        "w_proj": u(ks[9], (hidden_dim, polarities_dim), sH),
        "b_proj": u(ks[9], (1, polarities_dim), sH) * 0.3,
    }


if __name__ == "__main__":
    VOCAB, EMBED_DIM, HIDDEN_DIM, POLARITIES = 50, 32, 32, 3
    B, S, A = 2, 8, 4

    key = jax.random.PRNGKey(0)
    params = make_params(key, VOCAB, EMBED_DIM, HIDDEN_DIM, POLARITIES)

    # index 0 is padding; row 0 uses full length so max(x_len) == S
    text_indices = jnp.array([[5, 12, 7, 3, 9, 21, 14, 8],
                              [4, 17, 2, 6, 11, 0, 0, 0]], dtype=jnp.int32)
    aspect_indices = jnp.array([[3, 9, 22, 7],
                                [15, 6, 1, 30]], dtype=jnp.int32)

    forward = build_at_lstm(params)
    out = forward(text_indices, aspect_indices)
    out = jax.block_until_ready(out)

    ref = reference_forward(params, text_indices, aspect_indices)
    assert out.shape == ref.shape, (out.shape, ref.shape)
    # exact softmax division now (no approx reciprocal) -> tighter tolerance than before
    assert jnp.allclose(out, ref, atol=5e-4, rtol=5e-4), jnp.max(jnp.abs(out - ref))

    print("KERNEL_OK")
</pallas_src>

<mosaic_0001>
module attributes {stable_mosaic.version = 11 : i64} {
  func.func @at_lstm_kernel(%arg0: memref<40x32xf32, #tpu.memory_space<vmem>>, %arg1: memref<112x128xf32, #tpu.memory_space<vmem>>, %arg2: memref<8x128xf32, #tpu.memory_space<vmem>>, %arg3: memref<16x32xf32, #tpu.memory_space<vmem>>) attributes {dimension_semantics = [], scalar_prefetch = 0 : i64, scratch_operands = 1 : i64, tpu.core_type = #tpu.core_type<tc>} {
    %c0 = arith.constant 0 : index
    %c0_0 = arith.constant 0 : index
    %0 = vector.load %arg1[%c0, %c0_0] : memref<112x128xf32, #tpu.memory_space<vmem>>, vector<32x128xf32>
    %c32 = arith.constant 32 : index
    %c0_1 = arith.constant 0 : index
    %1 = vector.load %arg1[%c32, %c0_1] : memref<112x128xf32, #tpu.memory_space<vmem>>, vector<32x128xf32>
    %c64 = arith.constant 64 : index
    %c0_2 = arith.constant 0 : index
    %2 = vector.load %arg1[%c64, %c0_2] : memref<112x128xf32, #tpu.memory_space<vmem>>, vector<1x128xf32>
    %c0_3 = arith.constant 0 : index
    %c0_4 = arith.constant 0 : index
    %3 = vector.load %arg0[%c0_3, %c0_4] : memref<40x32xf32, #tpu.memory_space<vmem>>, vector<16x32xf32>
    %cst = arith.constant dense<0.000000e+00> : vector<16x128xf32>
    %4 = tpu.matmul %3, %0, %cst {dimension_numbers = #tpu.dot_dimension_numbers<[1], [0], [0], [1], [0, 0, 1, 1], [], []>} : vector<16x32xf32>, vector<32x128xf32>, vector<16x128xf32> -> vector<16x128xf32>
    %5 = vector.broadcast %2 : vector<1x128xf32> to vector<16x128xf32>
    %6 = arith.addf %4, %5 : vector<16x128xf32>
    %cst_5 = arith.constant 0.000000e+00 : f32
    %7 = vector.broadcast %cst_5 : f32 to vector<2x32xf32>
    %cst_6 = arith.constant 0.000000e+00 : f32
    %8 = vector.broadcast %cst_6 : f32 to vector<2x32xf32>
    %9 = vector.extract_strided_slice %6 {offsets = [0, 0], sizes = [2, 128], strides = [1, 1]} : vector<16x128xf32> to vector<2x128xf32>
    %cst_7 = arith.constant dense<0.000000e+00> : vector<2x128xf32>
    %10 = tpu.matmul %7, %1, %cst_7 {dimension_numbers = #tpu.dot_dimension_numbers<[1], [0], [0], [1], [0, 0, 1, 1], [], []>} : vector<2x32xf32>, vector<32x128xf32>, vector<2x128xf32> -> vector<2x128xf32>
    %11 = arith.addf %9, %10 : vector<2x128xf32>
    %12 = vector.extract_strided_slice %11 {offsets = [0, 0], sizes = [2, 96], strides = [1, 1]} : vector<2x128xf32> to vector<2x96xf32>
    %13 = arith.negf %12 : vector<2x96xf32>
    %14 = math.exp %13 : vector<2x96xf32>
    %cst_8 = arith.constant 1.000000e+00 : f32
    %15 = vector.broadcast %cst_8 : f32 to vector<2x96xf32>
    %16 = arith.addf %15, %14 : vector<2x96xf32>
    %17 = arith.divf %15, %16 : vector<2x96xf32>
    %18 = vector.extract_strided_slice %17 {offsets = [0, 32], sizes = [2, 32], strides = [1, 1]} : vector<2x96xf32> to vector<2x32xf32>
    %19 = arith.mulf %18, %8 : vector<2x32xf32>
    %20 = vector.extract_strided_slice %17 {offsets = [0, 0], sizes = [2, 32], strides = [1, 1]} : vector<2x96xf32> to vector<2x32xf32>
    %21 = vector.extract_strided_slice %11 {offsets = [0, 96], sizes = [2, 32], strides = [1, 1]} : vector<2x128xf32> to vector<2x32xf32>
    %22 = math.tanh %21 : vector<2x32xf32>
    %23 = arith.mulf %20, %22 : vector<2x32xf32>
    %24 = arith.addf %19, %23 : vector<2x32xf32>
    %25 = vector.extract_strided_slice %17 {offsets = [0, 64], sizes = [2, 32], strides = [1, 1]} : vector<2x96xf32> to vector<2x32xf32>
    %26 = math.tanh %24 : vector<2x32xf32>
    %27 = arith.mulf %25, %26 : vector<2x32xf32>
    %28 = vector.extract_strided_slice %27 {offsets = [0, 0], sizes = [1, 32], strides = [1, 1]} : vector<2x32xf32> to vector<1x32xf32>
    %c0_9 = arith.constant 0 : index
    %c0_10 = arith.constant 0 : index
    %29 = vector.load %arg3[%c0_9, %c0_10] : memref<16x32xf32, #tpu.memory_space<vmem>>, vector<1x32xf32>
    tpu.vector_store %arg3[%c0_9, %c0_10], %28 {strides = array<i32>} : memref<16x32xf32, #tpu.memory_space<vmem>>, vector<1x32xf32>,
    %30 = vector.extract_strided_slice %27 {offsets = [1, 0], sizes = [1, 32], strides = [1, 1]} : vector<2x32xf32> to vector<1x32xf32>
    %c8 = arith.constant 8 : index
    %c0_11 = arith.constant 0 : index
    %31 = vector.load %arg3[%c8, %c0_11] : memref<16x32xf32, #tpu.memory_space<vmem>>, vector<1x32xf32>
    tpu.vector_store %arg3[%c8, %c0_11], %30 {strides = array<i32>} : memref<16x32xf32, #tpu.memory_space<vmem>>, vector<1x32xf32>,
    %32 = vector.extract_strided_slice %6 {offsets = [2, 0], sizes = [2, 128], strides = [1, 1]} : vector<16x128xf32> to vector<2x128xf32>
    %cst_12 = arith.constant dense<0.000000e+00> : vector<2x128xf32>
    %33 = tpu.matmul %27, %1, %cst_12 {dimension_numbers = #tpu.dot_dimension_numbers<[1], [0], [0], [1], [0, 0, 1, 1], [], []>} : vector<2x32xf32>, vector<32x128xf32>, vector<2x128xf32> -> vector<2x128xf32>
    %34 = arith.addf %32, %33 : vector<2x128xf32>
    %35 = vector.extract_strided_slice %34 {offsets = [0, 0], sizes = [2, 96], strides = [1, 1]} : vector<2x128xf32> to vector<2x96xf32>
    %36 = arith.negf %35 : vector<2x96xf32>
    %37 = math.exp %36 : vector<2x96xf32>
    %cst_13 = arith.constant 1.000000e+00 : f32
    %38 = vector.broadcast %cst_13 : f32 to vector<2x96xf32>
    %39 = arith.addf %38, %37 : vector<2x96xf32>
    %40 = arith.divf %38, %39 : vector<2x96xf32>
    %41 = vector.extract_strided_slice %40 {offsets = [0, 32], sizes = [2, 32], strides = [1, 1]} : vector<2x96xf32> to vector<2x32xf32>
    %42 = arith.mulf %41, %24 : vector<2x32xf32>
    %43 = vector.extract_strided_slice %40 {offsets = [0, 0], sizes = [2, 32], strides = [1, 1]} : vector<2x96xf32> to vector<2x32xf32>
    %44 = vector.extract_strided_slice %34 {offsets = [0, 96], sizes = [2, 32], strides = [1, 1]} : vector<2x128xf32> to vector<2x32xf32>
    %45 = math.tanh %44 : vector<2x32xf32>
    %46 = arith.mulf %43, %45 : vector<2x32xf32>
    %47 = arith.addf %42, %46 : vector<2x32xf32>
    %48 = vector.extract_strided_slice %40 {offsets = [0, 64], sizes = [2, 32], strides = [1, 1]} : vector<2x96xf32> to vector<2x32xf32>
    %49 = math.tanh %47 : vector<2x32xf32>
    %50 = arith.mulf %48, %49 : vector<2x32xf32>
    %51 = vector.extract_strided_slice %50 {offsets = [0, 0], sizes = [1, 32], strides = [1, 1]} : vector<2x32xf32> to vector<1x32xf32>
    %c1 = arith.constant 1 : index
    %c0_14 = arith.constant 0 : index
    %52 = vector.load %arg3[%c1, %c0_14] : memref<16x32xf32, #tpu.memory_space<vmem>>, vector<1x32xf32>
    tpu.vector_store %arg3[%c1, %c0_14], %51 {strides = array<i32>} : memref<16x32xf32, #tpu.memory_space<vmem>>, vector<1x32xf32>,
    %53 = vector.extract_strided_slice %50 {offsets = [1, 0], sizes = [1, 32], strides = [1, 1]} : vector<2x32xf32> to vector<1x32xf32>
    %c9 = arith.constant 9 : index
    %c0_15 = arith.constant 0 : index
    %54 = vector.load %arg3[%c9, %c0_15] : memref<16x32xf32, #tpu.memory_space<vmem>>, vector<1x32xf32>
    tpu.vector_store %arg3[%c9, %c0_15], %53 {strides = array<i32>} : memref<16x32xf32, #tpu.memory_space<vmem>>, vector<1x32xf32>,
    %55 = vector.extract_strided_slice %6 {offsets = [4, 0], sizes = [2, 128], strides = [1, 1]} : vector<16x128xf32> to vector<2x128xf32>
    %cst_16 = arith.constant dense<0.000000e+00> : vector<2x128xf32>
    %56 = tpu.matmul %50, %1, %cst_16 {dimension_numbers = #tpu.dot_dimension_numbers<[1], [0], [0], [1], [0, 0, 1, 1], [], []>} : vector<2x32xf32>, vector<32x128xf32>, vector<2x128xf32> -> vector<2x128xf32>
    %57 = arith.addf %55, %56 : vector<2x128xf32>
    %58 = vector.extract_strided_slice %57 {offsets = [0, 0], sizes = [2, 96], strides = [1, 1]} : vector<2x128xf32> to vector<2x96xf32>
    %59 = arith.negf %58 : vector<2x96xf32>
    %60 = math.exp %59 : vector<2x96xf32>
    %cst_17 = arith.constant 1.000000e+00 : f32
    %61 = vector.broadcast %cst_17 : f32 to vector<2x96xf32>
    %62 = arith.addf %61, %60 : vector<2x96xf32>
    %63 = arith.divf %61, %62 : vector<2x96xf32>
    %64 = vector.extract_strided_slice %63 {offsets = [0, 32], sizes = [2, 32], strides = [1, 1]} : vector<2x96xf32> to vector<2x32xf32>
    %65 = arith.mulf %64, %47 : vector<2x32xf32>
    %66 = vector.extract_strided_slice %63 {offsets = [0, 0], sizes = [2, 32], strides = [1, 1]} : vector<2x96xf32> to vector<2x32xf32>
    %67 = vector.extract_strided_slice %57 {offsets = [0, 96], sizes = [2, 32], strides = [1, 1]} : vector<2x128xf32> to vector<2x32xf32>
    %68 = math.tanh %67 : vector<2x32xf32>
    %69 = arith.mulf %66, %68 : vector<2x32xf32>
    %70 = arith.addf %65, %69 : vector<2x32xf32>
    %71 = vector.extract_strided_slice %63 {offsets = [0, 64], sizes = [2, 32], strides = [1, 1]} : vector<2x96xf32> to vector<2x32xf32>
    %72 = math.tanh %70 : vector<2x32xf32>
    %73 = arith.mulf %71, %72 : vector<2x32xf32>
    %74 = vector.extract_strided_slice %73 {offsets = [0, 0], sizes = [1, 32], strides = [1, 1]} : vector<2x32xf32> to vector<1x32xf32>
    %c2 = arith.constant 2 : index
    %c0_18 = arith.constant 0 : index
    %75 = vector.load %arg3[%c2, %c0_18] : memref<16x32xf32, #tpu.memory_space<vmem>>, vector<1x32xf32>
    tpu.vector_store %arg3[%c2, %c0_18], %74 {strides = array<i32>} : memref<16x32xf32, #tpu.memory_space<vmem>>, vector<1x32xf32>,
    %76 = vector.extract_strided_slice %73 {offsets = [1, 0], sizes = [1, 32], strides = [1, 1]} : vector<2x32xf32> to vector<1x32xf32>
    %c10 = arith.constant 10 : index
    %c0_19 = arith.constant 0 : index
    %77 = vector.load %arg3[%c10, %c0_19] : memref<16x32xf32, #tpu.memory_space<vmem>>, vector<1x32xf32>
    tpu.vector_store %arg3[%c10, %c0_19], %76 {strides = array<i32>} : memref<16x32xf32, #tpu.memory_space<vmem>>, vector<1x32xf32>,
    %78 = vector.extract_strided_slice %6 {offsets = [6, 0], sizes = [2, 128], strides = [1, 1]} : vector<16x128xf32> to vector<2x128xf32>
    %cst_20 = arith.constant dense<0.000000e+00> : vector<2x128xf32>
    %79 = tpu.matmul %73, %1, %cst_20 {dimension_numbers = #tpu.dot_dimension_numbers<[1], [0], [0], [1], [0, 0, 1, 1], [], []>} : vector<2x32xf32>, vector<32x128xf32>, vector<2x128xf32> -> vector<2x128xf32>
    %80 = arith.addf %78, %79 : vector<2x128xf32>
    %81 = vector.extract_strided_slice %80 {offsets = [0, 0], sizes = [2, 96], strides = [1, 1]} : vector<2x128xf32> to vector<2x96xf32>
    %82 = arith.negf %81 : vector<2x96xf32>
    %83 = math.exp %82 : vector<2x96xf32>
    %cst_21 = arith.constant 1.000000e+00 : f32
    %84 = vector.broadcast %cst_21 : f32 to vector<2x96xf32>
    %85 = arith.addf %84, %83 : vector<2x96xf32>
    %86 = arith.divf %84, %85 : vector<2x96xf32>
    %87 = vector.extract_strided_slice %86 {offsets = [0, 32], sizes = [2, 32], strides = [1, 1]} : vector<2x96xf32> to vector<2x32xf32>
    %88 = arith.mulf %87, %70 : vector<2x32xf32>
    %89 = vector.extract_strided_slice %86 {offsets = [0, 0], sizes = [2, 32], strides = [1, 1]} : vector<2x96xf32> to vector<2x32xf32>
    %90 = vector.extract_strided_slice %80 {offsets = [0, 96], sizes = [2, 32], strides = [1, 1]} : vector<2x128xf32> to vector<2x32xf32>
    %91 = math.tanh %90 : vector<2x32xf32>
    %92 = arith.mulf %89, %91 : vector<2x32xf32>
    %93 = arith.addf %88, %92 : vector<2x32xf32>
    %94 = vector.extract_strided_slice %86 {offsets = [0, 64], sizes = [2, 32], strides = [1, 1]} : vector<2x96xf32> to vector<2x32xf32>
    %95 = math.tanh %93 : vector<2x32xf32>
    %96 = arith.mulf %94, %95 : vector<2x32xf32>
    %97 = vector.extract_strided_slice %96 {offsets = [0, 0], sizes = [1, 32], strides = [1, 1]} : vector<2x32xf32> to vector<1x32xf32>
    %c3 = arith.constant 3 : index
    %c0_22 = arith.constant 0 : index
    %98 = vector.load %arg3[%c3, %c0_22] : memref<16x32xf32, #tpu.memory_space<vmem>>, vector<1x32xf32>
    tpu.vector_store %arg3[%c3, %c0_22], %97 {strides = array<i32>} : memref<16x32xf32, #tpu.memory_space<vmem>>, vector<1x32xf32>,
    %99 = vector.extract_strided_slice %96 {offsets = [1, 0], sizes = [1, 32], strides = [1, 1]} : vector<2x32xf32> to vector<1x32xf32>
    %c11 = arith.constant 11 : index
    %c0_23 = arith.constant 0 : index
    %100 = vector.load %arg3[%c11, %c0_23] : memref<16x32xf32, #tpu.memory_space<vmem>>, vector<1x32xf32>
    tpu.vector_store %arg3[%c11, %c0_23], %99 {strides = array<i32>} : memref<16x32xf32, #tpu.memory_space<vmem>>, vector<1x32xf32>,
    %101 = vector.extract_strided_slice %6 {offsets = [8, 0], sizes = [2, 128], strides = [1, 1]} : vector<16x128xf32> to vector<2x128xf32>
    %cst_24 = arith.constant dense<0.000000e+00> : vector<2x128xf32>
    %102 = tpu.matmul %96, %1, %cst_24 {dimension_numbers = #tpu.dot_dimension_numbers<[1], [0], [0], [1], [0, 0, 1, 1], [], []>} : vector<2x32xf32>, vector<32x128xf32>, vector<2x128xf32> -> vector<2x128xf32>
    %103 = arith.addf %101, %102 : vector<2x128xf32>
    %104 = vector.extract_strided_slice %103 {offsets = [0, 0], sizes = [2, 96], strides = [1, 1]} : vector<2x128xf32> to vector<2x96xf32>
    %105 = arith.negf %104 : vector<2x96xf32>
    %106 = math.exp %105 : vector<2x96xf32>
    %cst_25 = arith.constant 1.000000e+00 : f32
    %107 = vector.broadcast %cst_25 : f32 to vector<2x96xf32>
    %108 = arith.addf %107, %106 : vector<2x96xf32>
    %109 = arith.divf %107, %108 : vector<2x96xf32>
    %110 = vector.extract_strided_slice %109 {offsets = [0, 32], sizes = [2, 32], strides = [1, 1]} : vector<2x96xf32> to vector<2x32xf32>
    %111 = arith.mulf %110, %93 : vector<2x32xf32>
    %112 = vector.extract_strided_slice %109 {offsets = [0, 0], sizes = [2, 32], strides = [1, 1]} : vector<2x96xf32> to vector<2x32xf32>
    %113 = vector.extract_strided_slice %103 {offsets = [0, 96], sizes = [2, 32], strides = [1, 1]} : vector<2x128xf32> to vector<2x32xf32>
    %114 = math.tanh %113 : vector<2x32xf32>
    %115 = arith.mulf %112, %114 : vector<2x32xf32>
    %116 = arith.addf %111, %115 : vector<2x32xf32>
    %117 = vector.extract_strided_slice %109 {offsets = [0, 64], sizes = [2, 32], strides = [1, 1]} : vector<2x96xf32> to vector<2x32xf32>
    %118 = math.tanh %116 : vector<2x32xf32>
    %119 = arith.mulf %117, %118 : vector<2x32xf32>
    %120 = vector.extract_strided_slice %119 {offsets = [0, 0], sizes = [1, 32], strides = [1, 1]} : vector<2x32xf32> to vector<1x32xf32>
    %c4 = arith.constant 4 : index
    %c0_26 = arith.constant 0 : index
    %121 = vector.load %arg3[%c4, %c0_26] : memref<16x32xf32, #tpu.memory_space<vmem>>, vector<1x32xf32>
    tpu.vector_store %arg3[%c4, %c0_26], %120 {strides = array<i32>} : memref<16x32xf32, #tpu.memory_space<vmem>>, vector<1x32xf32>,
    %122 = vector.extract_strided_slice %119 {offsets = [1, 0], sizes = [1, 32], strides = [1, 1]} : vector<2x32xf32> to vector<1x32xf32>
    %c12 = arith.constant 12 : index
    %c0_27 = arith.constant 0 : index
    %123 = vector.load %arg3[%c12, %c0_27] : memref<16x32xf32, #tpu.memory_space<vmem>>, vector<1x32xf32>
    tpu.vector_store %arg3[%c12, %c0_27], %122 {strides = array<i32>} : memref<16x32xf32, #tpu.memory_space<vmem>>, vector<1x32xf32>,
    %124 = vector.extract_strided_slice %6 {offsets = [10, 0], sizes = [2, 128], strides = [1, 1]} : vector<16x128xf32> to vector<2x128xf32>
    %cst_28 = arith.constant dense<0.000000e+00> : vector<2x128xf32>
    %125 = tpu.matmul %119, %1, %cst_28 {dimension_numbers = #tpu.dot_dimension_numbers<[1], [0], [0], [1], [0, 0, 1, 1], [], []>} : vector<2x32xf32>, vector<32x128xf32>, vector<2x128xf32> -> vector<2x128xf32>
    %126 = arith.addf %124, %125 : vector<2x128xf32>
    %127 = vector.extract_strided_slice %126 {offsets = [0, 0], sizes = [2, 96], strides = [1, 1]} : vector<2x128xf32> to vector<2x96xf32>
    %128 = arith.negf %127 : vector<2x96xf32>
    %129 = math.exp %128 : vector<2x96xf32>
    %cst_29 = arith.constant 1.000000e+00 : f32
    %130 = vector.broadcast %cst_29 : f32 to vector<2x96xf32>
    %131 = arith.addf %130, %129 : vector<2x96xf32>
    %132 = arith.divf %130, %131 : vector<2x96xf32>
    %133 = vector.extract_strided_slice %132 {offsets = [0, 32], sizes = [2, 32], strides = [1, 1]} : vector<2x96xf32> to vector<2x32xf32>
    %134 = arith.mulf %133, %116 : vector<2x32xf32>
    %135 = vector.extract_strided_slice %132 {offsets = [0, 0], sizes = [2, 32], strides = [1, 1]} : vector<2x96xf32> to vector<2x32xf32>
    %136 = vector.extract_strided_slice %126 {offsets = [0, 96], sizes = [2, 32], strides = [1, 1]} : vector<2x128xf32> to vector<2x32xf32>
    %137 = math.tanh %136 : vector<2x32xf32>
    %138 = arith.mulf %135, %137 : vector<2x32xf32>
    %139 = arith.addf %134, %138 : vector<2x32xf32>
    %140 = vector.extract_strided_slice %132 {offsets = [0, 64], sizes = [2, 32], strides = [1, 1]} : vector<2x96xf32> to vector<2x32xf32>
    %141 = math.tanh %139 : vector<2x32xf32>
    %142 = arith.mulf %140, %141 : vector<2x32xf32>
    %143 = vector.extract_strided_slice %142 {offsets = [0, 0], sizes = [1, 32], strides = [1, 1]} : vector<2x32xf32> to vector<1x32xf32>
    %c5 = arith.constant 5 : index
    %c0_30 = arith.constant 0 : index
    %144 = vector.load %arg3[%c5, %c0_30] : memref<16x32xf32, #tpu.memory_space<vmem>>, vector<1x32xf32>
    tpu.vector_store %arg3[%c5, %c0_30], %143 {strides = array<i32>} : memref<16x32xf32, #tpu.memory_space<vmem>>, vector<1x32xf32>,
    %145 = vector.extract_strided_slice %142 {offsets = [1, 0], sizes = [1, 32], strides = [1, 1]} : vector<2x32xf32> to vector<1x32xf32>
    %c13 = arith.constant 13 : index
    %c0_31 = arith.constant 0 : index
    %146 = vector.load %arg3[%c13, %c0_31] : memref<16x32xf32, #tpu.memory_space<vmem>>, vector<1x32xf32>
    tpu.vector_store %arg3[%c13, %c0_31], %145 {strides = array<i32>} : memref<16x32xf32, #tpu.memory_space<vmem>>, vector<1x32xf32>,
    %147 = vector.extract_strided_slice %6 {offsets = [12, 0], sizes = [2, 128], strides = [1, 1]} : vector<16x128xf32> to vector<2x128xf32>
    %cst_32 = arith.constant dense<0.000000e+00> : vector<2x128xf32>
    %148 = tpu.matmul %142, %1, %cst_32 {dimension_numbers = #tpu.dot_dimension_numbers<[1], [0], [0], [1], [0, 0, 1, 1], [], []>} : vector<2x32xf32>, vector<32x128xf32>, vector<2x128xf32> -> vector<2x128xf32>
    %149 = arith.addf %147, %148 : vector<2x128xf32>
    %150 = vector.extract_strided_slice %149 {offsets = [0, 0], sizes = [2, 96], strides = [1, 1]} : vector<2x128xf32> to vector<2x96xf32>
    %151 = arith.negf %150 : vector<2x96xf32>
    %152 = math.exp %151 : vector<2x96xf32>
    %cst_33 = arith.constant 1.000000e+00 : f32
    %153 = vector.broadcast %cst_33 : f32 to vector<2x96xf32>
    %154 = arith.addf %153, %152 : vector<2x96xf32>
    %155 = arith.divf %153, %154 : vector<2x96xf32>
    %156 = vector.extract_strided_slice %155 {offsets = [0, 32], sizes = [2, 32], strides = [1, 1]} : vector<2x96xf32> to vector<2x32xf32>
    %157 = arith.mulf %156, %139 : vector<2x32xf32>
    %158 = vector.extract_strided_slice %155 {offsets = [0, 0], sizes = [2, 32], strides = [1, 1]} : vector<2x96xf32> to vector<2x32xf32>
    %159 = vector.extract_strided_slice %149 {offsets = [0, 96], sizes = [2, 32], strides = [1, 1]} : vector<2x128xf32> to vector<2x32xf32>
    %160 = math.tanh %159 : vector<2x32xf32>
    %161 = arith.mulf %158, %160 : vector<2x32xf32>
    %162 = arith.addf %157, %161 : vector<2x32xf32>
    %163 = vector.extract_strided_slice %155 {offsets = [0, 64], sizes = [2, 32], strides = [1, 1]} : vector<2x96xf32> to vector<2x32xf32>
    %164 = math.tanh %162 : vector<2x32xf32>
    %165 = arith.mulf %163, %164 : vector<2x32xf32>
    %166 = vector.extract_strided_slice %165 {offsets = [0, 0], sizes = [1, 32], strides = [1, 1]} : vector<2x32xf32> to vector<1x32xf32>
    %c6 = arith.constant 6 : index
    %c0_34 = arith.constant 0 : index
    %167 = vector.load %arg3[%c6, %c0_34] : memref<16x32xf32, #tpu.memory_space<vmem>>, vector<1x32xf32>
    tpu.vector_store %arg3[%c6, %c0_34], %166 {strides = array<i32>} : memref<16x32xf32, #tpu.memory_space<vmem>>, vector<1x32xf32>,
    %168 = vector.extract_strided_slice %165 {offsets = [1, 0], sizes = [1, 32], strides = [1, 1]} : vector<2x32xf32> to vector<1x32xf32>
    %c14 = arith.constant 14 : index
    %c0_35 = arith.constant 0 : index
    %169 = vector.load %arg3[%c14, %c0_35] : memref<16x32xf32, #tpu.memory_space<vmem>>, vector<1x32xf32>
    tpu.vector_store %arg3[%c14, %c0_35], %168 {strides = array<i32>} : memref<16x32xf32, #tpu.memory_space<vmem>>, vector<1x32xf32>,
    %170 = vector.extract_strided_slice %6 {offsets = [14, 0], sizes = [2, 128], strides = [1, 1]} : vector<16x128xf32> to vector<2x128xf32>
    %cst_36 = arith.constant dense<0.000000e+00> : vector<2x128xf32>
    %171 = tpu.matmul %165, %1, %cst_36 {dimension_numbers = #tpu.dot_dimension_numbers<[1], [0], [0], [1], [0, 0, 1, 1], [], []>} : vector<2x32xf32>, vector<32x128xf32>, vector<2x128xf32> -> vector<2x128xf32>
    %172 = arith.addf %170, %171 : vector<2x128xf32>
    %173 = vector.extract_strided_slice %172 {offsets = [0, 0], sizes = [2, 96], strides = [1, 1]} : vector<2x128xf32> to vector<2x96xf32>
    %174 = arith.negf %173 : vector<2x96xf32>
    %175 = math.exp %174 : vector<2x96xf32>
    %cst_37 = arith.constant 1.000000e+00 : f32
    %176 = vector.broadcast %cst_37 : f32 to vector<2x96xf32>
    %177 = arith.addf %176, %175 : vector<2x96xf32>
    %178 = arith.divf %176, %177 : vector<2x96xf32>
    %179 = vector.extract_strided_slice %178 {offsets = [0, 32], sizes = [2, 32], strides = [1, 1]} : vector<2x96xf32> to vector<2x32xf32>
    %180 = arith.mulf %179, %162 : vector<2x32xf32>
    %181 = vector.extract_strided_slice %178 {offsets = [0, 0], sizes = [2, 32], strides = [1, 1]} : vector<2x96xf32> to vector<2x32xf32>
    %182 = vector.extract_strided_slice %172 {offsets = [0, 96], sizes = [2, 32], strides = [1, 1]} : vector<2x128xf32> to vector<2x32xf32>
    %183 = math.tanh %182 : vector<2x32xf32>
    %184 = arith.mulf %181, %183 : vector<2x32xf32>
    %185 = arith.addf %180, %184 : vector<2x32xf32>
    %186 = vector.extract_strided_slice %178 {offsets = [0, 64], sizes = [2, 32], strides = [1, 1]} : vector<2x96xf32> to vector<2x32xf32>
    %187 = math.tanh %185 : vector<2x32xf32>
    %188 = arith.mulf %186, %187 : vector<2x32xf32>
    %189 = vector.extract_strided_slice %188 {offsets = [0, 0], sizes = [1, 32], strides = [1, 1]} : vector<2x32xf32> to vector<1x32xf32>
    %c7 = arith.constant 7 : index
    %c0_38 = arith.constant 0 : index
    %190 = vector.load %arg3[%c7, %c0_38] : memref<16x32xf32, #tpu.memory_space<vmem>>, vector<1x32xf32>
    tpu.vector_store %arg3[%c7, %c0_38], %189 {strides = array<i32>} : memref<16x32xf32, #tpu.memory_space<vmem>>, vector<1x32xf32>,
    %191 = vector.extract_strided_slice %188 {offsets = [1, 0], sizes = [1, 32], strides = [1, 1]} : vector<2x32xf32> to vector<1x32xf32>
    %c15 = arith.constant 15 : index
    %c0_39 = arith.constant 0 : index
    %192 = vector.load %arg3[%c15, %c0_39] : memref<16x32xf32, #tpu.memory_space<vmem>>, vector<1x32xf32>
    tpu.vector_store %arg3[%c15, %c0_39], %191 {strides = array<i32>} : memref<16x32xf32, #tpu.memory_space<vmem>>, vector<1x32xf32>,
    %c24 = arith.constant 24 : index
    %c0_40 = arith.constant 0 : index
    %193 = vector.load %arg0[%c24, %c0_40] : memref<40x32xf32, #tpu.memory_space<vmem>>, vector<16x32xf32>
    %c0_41 = arith.constant 0 : index
    %c0_42 = arith.constant 0 : index
    %194 = vector.load %arg3[%c0_41, %c0_42] : memref<16x32xf32, #tpu.memory_space<vmem>>, vector<16x32xf32>
    %195 = arith.mulf %194, %193 : vector<16x32xf32>
    %c72 = arith.constant 72 : index
    %c0_43 = arith.constant 0 : index
    %196 = vector.load %arg1[%c72, %c0_43] : memref<112x128xf32, #tpu.memory_space<vmem>>, vector<32x128xf32>
    %c104 = arith.constant 104 : index
    %c0_44 = arith.constant 0 : index
    %197 = vector.load %arg1[%c104, %c0_44] : memref<112x128xf32, #tpu.memory_space<vmem>>, vector<1x128xf32>
    %c105 = arith.constant 105 : index
    %c0_45 = arith.constant 0 : index
    %198 = vector.load %arg1[%c105, %c0_45] : memref<112x128xf32, #tpu.memory_space<vmem>>, vector<1x128xf32>
    %cst_46 = arith.constant dense<0.000000e+00> : vector<16x128xf32>
    %199 = tpu.matmul %195, %196, %cst_46 {dimension_numbers = #tpu.dot_dimension_numbers<[1], [0], [0], [1], [0, 0, 1, 1], [], []>} : vector<16x32xf32>, vector<32x128xf32>, vector<16x128xf32> -> vector<16x128xf32>
    %200 = vector.broadcast %197 : vector<1x128xf32> to vector<16x128xf32>
    %201 = arith.addf %199, %200 : vector<16x128xf32>
    %c65 = arith.constant 65 : index
    %c0_47 = arith.constant 0 : index
    %202 = vector.load %arg1[%c65, %c0_47] : memref<112x128xf32, #tpu.memory_space<vmem>>, vector<1x128xf32>
    %c66 = arith.constant 66 : index
    %c0_48 = arith.constant 0 : index
    %203 = vector.load %arg1[%c66, %c0_48] : memref<112x128xf32, #tpu.memory_space<vmem>>, vector<1x128xf32>
    %204 = vector.extract_strided_slice %202 {offsets = [0, 0], sizes = [1, 32], strides = [1, 1]} : vector<1x128xf32> to vector<1x32xf32>
    %205 = vector.extract_strided_slice %202 {offsets = [0, 32], sizes = [1, 1], strides = [1, 1]} : vector<1x128xf32> to vector<1x1xf32>
    %206 = vector.extract_strided_slice %203 {offsets = [0, 0], sizes = [1, 32], strides = [1, 1]} : vector<1x128xf32> to vector<1x32xf32>
    %cst_49 = arith.constant dense<0.000000e+00> : vector<1x16xf32>
    %207 = tpu.matmul %204, %195, %cst_49 {dimension_numbers = #tpu.dot_dimension_numbers<[1], [1], [0], [0], [0, 0, 1, 0], [], []>} : vector<1x32xf32>, vector<16x32xf32>, vector<1x16xf32> -> vector<1x16xf32>
    %c16 = arith.constant 16 : index
    %c0_50 = arith.constant 0 : index
    %208 = vector.load %arg0[%c16, %c0_50] : memref<40x32xf32, #tpu.memory_space<vmem>>, vector<8x32xf32>
    %cst_51 = arith.constant dense<0.000000e+00> : vector<8x1xf32>
    %209 = tpu.matmul %208, %206, %cst_51 {dimension_numbers = #tpu.dot_dimension_numbers<[1], [1], [0], [0], [0, 0, 1, 0], [], []>} : vector<8x32xf32>, vector<1x32xf32>, vector<8x1xf32> -> vector<8x1xf32>
    %210 = vector.extract_strided_slice %209 {offsets = [0, 0], sizes = [4, 1], strides = [1, 1]} : vector<8x1xf32> to vector<4x1xf32>
    %211 = vector.extract_strided_slice %207 {offsets = [0, 0], sizes = [1, 8], strides = [1, 1]} : vector<1x16xf32> to vector<1x8xf32>
    %212 = vector.broadcast %210 : vector<4x1xf32> to vector<4x8xf32>
    %213 = vector.broadcast %211 : vector<1x8xf32> to vector<4x8xf32>
    %214 = arith.addf %212, %213 : vector<4x8xf32>
    %215 = vector.broadcast %205 : vector<1x1xf32> to vector<4x8xf32>
    %216 = arith.addf %214, %215 : vector<4x8xf32>
    %217 = math.tanh %216 : vector<4x8xf32>
    %218 = math.exp %217 : vector<4x8xf32>
    %cst_52 = arith.constant dense<0.000000e+00> : vector<4xf32>
    %219 = vector.multi_reduction <add>, %218, %cst_52 [1] : vector<4x8xf32> to vector<4xf32>
    %220 = vector.shape_cast %219 : vector<4xf32> to vector<4x1xf32>
    %221 = vector.broadcast %220 : vector<4x1xf32> to vector<4x8xf32>
    %222 = arith.divf %218, %221 : vector<4x8xf32>
    %223 = vector.extract_strided_slice %201 {offsets = [0, 0], sizes = [8, 128], strides = [1, 1]} : vector<16x128xf32> to vector<8x128xf32>
    %cst_53 = arith.constant dense<0.000000e+00> : vector<4x128xf32>
    %224 = tpu.matmul %222, %223, %cst_53 {dimension_numbers = #tpu.dot_dimension_numbers<[1], [0], [0], [1], [0, 0, 1, 1], [], []>} : vector<4x8xf32>, vector<8x128xf32>, vector<4x128xf32> -> vector<4x128xf32>
    %225 = vector.broadcast %198 : vector<1x128xf32> to vector<4x128xf32>
    %226 = arith.addf %224, %225 : vector<4x128xf32>
    %c0_54 = arith.constant 0 : index
    %c0_55 = arith.constant 0 : index
    %227 = vector.load %arg2[%c0_54, %c0_55] : memref<8x128xf32, #tpu.memory_space<vmem>>, vector<4x128xf32>
    tpu.vector_store %arg2[%c0_54, %c0_55], %226 {strides = array<i32>} : memref<8x128xf32, #tpu.memory_space<vmem>>, vector<4x128xf32>,
    %228 = vector.extract_strided_slice %209 {offsets = [4, 0], sizes = [4, 1], strides = [1, 1]} : vector<8x1xf32> to vector<4x1xf32>
    %229 = vector.extract_strided_slice %207 {offsets = [0, 8], sizes = [1, 8], strides = [1, 1]} : vector<1x16xf32> to vector<1x8xf32>
    %230 = vector.broadcast %228 : vector<4x1xf32> to vector<4x8xf32>
    %231 = vector.broadcast %229 : vector<1x8xf32> to vector<4x8xf32>
    %232 = arith.addf %230, %231 : vector<4x8xf32>
    %233 = vector.broadcast %205 : vector<1x1xf32> to vector<4x8xf32>
    %234 = arith.addf %232, %233 : vector<4x8xf32>
    %235 = math.tanh %234 : vector<4x8xf32>
    %236 = math.exp %235 : vector<4x8xf32>
    %cst_56 = arith.constant dense<0.000000e+00> : vector<4xf32>
    %237 = vector.multi_reduction <add>, %236, %cst_56 [1] : vector<4x8xf32> to vector<4xf32>
    %238 = vector.shape_cast %237 : vector<4xf32> to vector<4x1xf32>
    %239 = vector.broadcast %238 : vector<4x1xf32> to vector<4x8xf32>
    %240 = arith.divf %236, %239 : vector<4x8xf32>
    %241 = vector.extract_strided_slice %201 {offsets = [8, 0], sizes = [8, 128], strides = [1, 1]} : vector<16x128xf32> to vector<8x128xf32>
    %cst_57 = arith.constant dense<0.000000e+00> : vector<4x128xf32>
    %242 = tpu.matmul %240, %241, %cst_57 {dimension_numbers = #tpu.dot_dimension_numbers<[1], [0], [0], [1], [0, 0, 1, 1], [], []>} : vector<4x8xf32>, vector<8x128xf32>, vector<4x128xf32> -> vector<4x128xf32>
    %243 = vector.broadcast %198 : vector<1x128xf32> to vector<4x128xf32>
    %244 = arith.addf %242, %243 : vector<4x128xf32>
    %c4_58 = arith.constant 4 : index
    %c0_59 = arith.constant 0 : index
    %245 = vector.load %arg2[%c4_58, %c0_59] : memref<8x128xf32, #tpu.memory_space<vmem>>, vector<4x128xf32>
    tpu.vector_store %arg2[%c4_58, %c0_59], %244 {strides = array<i32>} : memref<8x128xf32, #tpu.memory_space<vmem>>, vector<4x128xf32>,
    return
  }
}

</mosaic_0001>

<llo_original>
// kernel: forward.1
$region0: #{forward.1}
  #allocation0 [shape = 'u32[]', space=smem, size = 0x4, offset = 0x4, fixed_abs, tag = 'smem constant byte address 0x4 - core index']
  #allocation1 [shape = 'u32[144,128]{1,0:T(1,128)}', space=vmem, size = 0x12000, scoped, tag = 'internal scratch']
  #allocation2 [shape = 'f32[16,32]{1,0:T(8,128)}', space=vmem, size = 0x2000, scoped, tag = 'scratch operand']
  %s0 = inlined_call_operand.vmem [shape: f32[40,32], index: 0, kind: input, shape index: {}]
  %s1 = inlined_call_operand.vmem [shape: f32[112,128], index: 1, kind: input, shape index: {}]
  %s2 = inlined_call_operand.vmem [shape: f32[8,128], index: 2, kind: output, shape index: {}]
  %s3 = sld [smem:[#allocation0]]
  $region18: #{forward.1} parent=0
    _
  %s5 = ssub.s32 1, %s3
  %s6 = scalar_select 0, %s5, %s3
  // Predicated region
  $region2: #{forward.1} parent=0 // pred_check
    _
  $region3: #{forward.1} parent=0 // pred_check_branch
    %8 = sbr.rel (0) target = $region5
  $region4: #{forward.1} parent=0 // pred_region
    _
  $region5: #{forward.1} parent=0 // pred_fallthru
    _
  // Predicated region
  $region6: #{forward.1} parent=0 // pred_check
    _
  $region7: #{forward.1} parent=0 // pred_check_branch
    %10 = sbr.rel (0) target = $region9
  $region8: #{forward.1} parent=0 // pred_region
    _
  $region9: #{forward.1} parent=0 // pred_fallthru
    _
  %v11 = vld [vmem:[%s1] sm:$0xff]
  %v12 = vld [vmem:[%s1 + $0x8] sm:$0xff]
  %v13 = vld [vmem:[%s1 + $0x10] sm:$0xff]
  %v14 = vld [vmem:[%s1 + $0x18] sm:$0xff]
  %v15 = vld [vmem:[%s1 + $0x20] sm:$0xff]
  %v16 = vld [vmem:[%s1 + $0x28] sm:$0xff]
  %v17 = vld [vmem:[%s1 + $0x30] sm:$0xff]
  %v18 = vld [vmem:[%s1 + $0x38] sm:$0xff]
  %v19 = vld [vmem:[%s1 + $0x40] sm:$0x1]
  %v20 = vld [vmem:[%s0] sm:$0xff]
  %v21 = vld [vmem:[%s0 + $0x8] sm:$0xff]
  %v22 = vlaneseq
  %v23 = vshrl.u32 %v22, 7
  %v24 = vsub.s32 0, %v23
  %v25 = vrot.slane %v19, %v24
  %vm26 = vcmask 261120
  %v28 = vsel %vm26, %v20, 0
  %v31 = vsel %vm26, %v21, 0
  %33 = vmatprep.subr.mxu0 0.0
  %34 = vmatpush1.msra.mxu0 %v11
  %35 = vmatprep.subr.mxu0 0.0
  %36 = vmatpush1.msra.mxu0 %v12
  %37 = vmatprep.subr.mxu0 0.0
  %38 = vmatpush1.msra.mxu0 %v13
  %39 = vmatprep.subr.mxu0 0.0
  %40 = vmatpush1.msra.mxu0 %v14
  %41 = vmatprep.subr.mxu0 0.0
  %42 = vmatpush1.msra.mxu0 0.0
  %43 = vmatprep.subr.mxu0 0.0
  %44 = vmatpush1.msra.mxu0 0.0
  %45 = vmatprep.subr.mxu0 0.0
  %46 = vmatpush1.msra.mxu0 0.0
  %47 = vmatprep.subr.mxu0 0.0
  %48 = vmatpush1.msra.mxu0 0.0
  %49 = vmatprep.subr.mxu0 0.0
  %50 = vmatpush1.msra.mxu0 0.0
  %51 = vmatprep.subr.mxu0 0.0
  %52 = vmatpush1.msra.mxu0 0.0
  %53 = vmatprep.subr.mxu0 0.0
  %54 = vmatpush1.msra.mxu0 0.0
  %55 = vmatprep.subr.mxu0 0.0
  %56 = vmatpush1.msra.mxu0 0.0
  %57 = vmatprep.subr.mxu0 0.0
  %58 = vmatpush1.msra.mxu0 0.0
  %59 = vmatprep.subr.mxu0 0.0
  %60 = vmatpush1.msra.mxu0 0.0
  %61 = vmatprep.subr.mxu0 0.0
  %62 = vmatpush1.msra.mxu0 0.0
  %63 = vmatprep.subr.mxu0 0.0
  %64 = vmatpush1.msra.mxu0 0.0
  %65 = vmatprep.subr.mxu0 0.0
  %66 = vmatpush1.msra.mxu0 0.0
  %67 = vmatprep.subr.mxu0 0.0
  %68 = vmatpush1.msra.mxu0 0.0
  %69 = vmatprep.subr.mxu0 0.0
  %70 = vmatpush1.msra.mxu0 0.0
  %71 = vmatprep.subr.mxu0 0.0
  %72 = vmatpush1.msra.mxu0 0.0
  %73 = vmatprep.subr.mxu0 0.0
  %74 = vmatpush1.msra.mxu0 0.0
  %75 = vmatprep.subr.mxu0 0.0
  %76 = vmatpush1.msra.mxu0 0.0
  %77 = vmatprep.subr.mxu0 0.0
  %78 = vmatpush1.msra.mxu0 0.0
  %79 = vmatprep.subr.mxu0 0.0
  %80 = vmatpush1.msra.mxu0 0.0
  %81 = vmatprep.subr.mxu0 0.0
  %82 = vmatpush1.msra.mxu0 0.0
  %83 = vmatprep.subr.mxu0 0.0
  %84 = vmatpush1.msra.mxu0 0.0
  %85 = vmatprep.subr.mxu0 0.0
  %86 = vmatpush1.msra.mxu0 0.0
  %87 = vmatprep.subr.mxu0 0.0
  %88 = vmatpush1.msra.mxu0 0.0
  %89 = vmatprep.subr.mxu0 0.0
  %90 = vmatpush1.msra.mxu0 0.0
  %91 = vmatprep.subr.mxu0 0.0
  %92 = vmatpush1.msra.mxu0 0.0
  %93 = vmatprep.subr.mxu0 0.0
  %94 = vmatpush1.msra.mxu0 0.0
  %95 = vmatprep.subr.mxu0 0.0
  %96 = vmatpush1.msra.mxu0 0.0
  %97 = vmatprep.mubr.f32.mxu0 0.0
  %98 = vmatmul.mubr.f32.gmra.mrb[0].mxu0 %v28
  %v99 = vpop.f32.mrb[0].mxu0
  %v100 = vadd.f32 %v25, %v99
  %v101 = vpop.f32.mrb[0].mxu0
  %102 = vmatprep.mubr.f32.mxu0 0.0
  %103 = vmatmul.mubr.f32.gmra.mrb[0].mxu0 %v31
  %v104 = vpop.f32.mrb[0].mxu0
  %v105 = vadd.f32 %v25, %v104
  %v106 = vpop.f32.mrb[0].mxu0
  %107 = vdwg.mxu0
  %v109 = vsel %vm26, 0.0, 0
  %111 = vmatprep.subr.mxu0 0.0
  %112 = vmatpush1.msra.mxu0 %v15
  %113 = vmatprep.subr.mxu0 0.0
  %114 = vmatpush1.msra.mxu0 %v16
  %115 = vmatprep.subr.mxu0 0.0
  %116 = vmatpush1.msra.mxu0 %v17
  %117 = vmatprep.subr.mxu0 0.0
  %118 = vmatpush1.msra.mxu0 %v18
  %119 = vmatprep.subr.mxu0 0.0
  %120 = vmatpush1.msra.mxu0 0.0
  %121 = vmatprep.subr.mxu0 0.0
  %122 = vmatpush1.msra.mxu0 0.0
  %123 = vmatprep.subr.mxu0 0.0
  %124 = vmatpush1.msra.mxu0 0.0
  %125 = vmatprep.subr.mxu0 0.0
  %126 = vmatpush1.msra.mxu0 0.0
  %127 = vmatprep.subr.mxu0 0.0
  %128 = vmatpush1.msra.mxu0 0.0
  %129 = vmatprep.subr.mxu0 0.0
  %130 = vmatpush1.msra.mxu0 0.0
  %131 = vmatprep.subr.mxu0 0.0
  %132 = vmatpush1.msra.mxu0 0.0
  %133 = vmatprep.subr.mxu0 0.0
  %134 = vmatpush1.msra.mxu0 0.0
  %135 = vmatprep.subr.mxu0 0.0
  %136 = vmatpush1.msra.mxu0 0.0
  %137 = vmatprep.subr.mxu0 0.0
  %138 = vmatpush1.msra.mxu0 0.0
  %139 = vmatprep.subr.mxu0 0.0
  %140 = vmatpush1.msra.mxu0 0.0
  %141 = vmatprep.subr.mxu0 0.0
  %142 = vmatpush1.msra.mxu0 0.0
  %143 = vmatprep.subr.mxu0 0.0
  %144 = vmatpush1.msra.mxu0 0.0
  %145 = vmatprep.subr.mxu0 0.0
  %146 = vmatpush1.msra.mxu0 0.0
  %147 = vmatprep.subr.mxu0 0.0
  %148 = vmatpush1.msra.mxu0 0.0
  %149 = vmatprep.subr.mxu0 0.0
  %150 = vmatpush1.msra.mxu0 0.0
  %151 = vmatprep.subr.mxu0 0.0
  %152 = vmatpush1.msra.mxu0 0.0
  %153 = vmatprep.subr.mxu0 0.0
  %154 = vmatpush1.msra.mxu0 0.0
  %155 = vmatprep.subr.mxu0 0.0
  %156 = vmatpush1.msra.mxu0 0.0
  %157 = vmatprep.subr.mxu0 0.0
  %158 = vmatpush1.msra.mxu0 0.0
  %159 = vmatprep.subr.mxu0 0.0
  %160 = vmatpush1.msra.mxu0 0.0
  %161 = vmatprep.subr.mxu0 0.0
  %162 = vmatpush1.msra.mxu0 0.0
  %163 = vmatprep.subr.mxu0 0.0
  %164 = vmatpush1.msra.mxu0 0.0
  %165 = vmatprep.subr.mxu0 0.0
  %166 = vmatpush1.msra.mxu0 0.0
  %167 = vmatprep.subr.mxu0 0.0
  %168 = vmatpush1.msra.mxu0 0.0
  %169 = vmatprep.subr.mxu0 0.0
  %170 = vmatpush1.msra.mxu0 0.0
  %171 = vmatprep.subr.mxu0 0.0
  %172 = vmatpush1.msra.mxu0 0.0
  %173 = vmatprep.subr.mxu0 0.0
  %174 = vmatpush1.msra.mxu0 0.0
  %175 = vmatprep.mubr.f32.mxu0 0.0
  %176 = vmatmul.mubr.f32.gmra.mrb[0].mxu0 %v109
  %v177 = vpop.f32.mrb[0].mxu0
  %v178 = vadd.f32 0.0, %v177
  %v179 = vpop.f32.mrb[0].mxu0
  %180 = vdwg.mxu0
  %v181 = vadd.f32 %v100, %v178
  %v182 = vxor.u32 %v181, 2147483648
  %v183 = vmul.f32 %v182, 1.442695
  %v184 = vpow.pop %v183
  %v185 = vadd.f32 %v184, 1.0
  %v186 = vrcp.pop %v185
  %v187 = vmul.f32 1.0, %v186
  %v188 = vmul.f32 %v187, 0.0
  %v189 = vtanh.pop %v181
  %191 = vrot.lane.b32.xlu0 %v189, 32
  %v192 = vpop.permute.xlu0 %191
  %v194 = vmul.f32 %v187, %v192
  %196 = vrot.lane.b32.xlu0 %v194, 32
  %v197 = vpop.permute.xlu0 %196
  %v199 = vadd.f32 %v188, %v197
  %v200 = vtanh.pop %v199
  %202 = vrot.lane.b32.xlu0 %v200, 32
  %v203 = vpop.permute.xlu0 %202
  %v205 = vmul.f32 %v187, %v203
  %207 = vrot.lane.b32.xlu0 %v205, 64
  %v208 = vpop.permute.xlu0 %207
  %vm210 = vcmask 253952
  %211 = vst.msk [vmem:[#allocation2] sm:$0x1] %vm210, %v208
  %vm212 = vcmask 254977
  %213 = vst.msk [vmem:[#allocation2 + $0x7] sm:$0x2] %vm212, %v208
  %v214 = vsel %vm26, %v208, 0
  %216 = vmatprep.subr.mxu0 0.0
  %217 = vmatpush1.msra.mxu0 %v15
  %218 = vmatprep.subr.mxu0 0.0
  %219 = vmatpush1.msra.mxu0 %v16
  %220 = vmatprep.subr.mxu0 0.0
  %221 = vmatpush1.msra.mxu0 %v17
  %222 = vmatprep.subr.mxu0 0.0
  %223 = vmatpush1.msra.mxu0 %v18
  %224 = vmatprep.subr.mxu0 0.0
  %225 = vmatpush1.msra.mxu0 0.0
  %226 = vmatprep.subr.mxu0 0.0
  %227 = vmatpush1.msra.mxu0 0.0
  %228 = vmatprep.subr.mxu0 0.0
  %229 = vmatpush1.msra.mxu0 0.0
  %230 = vmatprep.subr.mxu0 0.0
  %231 = vmatpush1.msra.mxu0 0.0
  %232 = vmatprep.subr.mxu0 0.0
  %233 = vmatpush1.msra.mxu0 0.0
  %234 = vmatprep.subr.mxu0 0.0
  %235 = vmatpush1.msra.mxu0 0.0
  %236 = vmatprep.subr.mxu0 0.0
  %237 = vmatpush1.msra.mxu0 0.0
  %238 = vmatprep.subr.mxu0 0.0
  %239 = vmatpush1.msra.mxu0 0.0
  %240 = vmatprep.subr.mxu0 0.0
  %241 = vmatpush1.msra.mxu0 0.0
  %242 = vmatprep.subr.mxu0 0.0
  %243 = vmatpush1.msra.mxu0 0.0
  %244 = vmatprep.subr.mxu0 0.0
  %245 = vmatpush1.msra.mxu0 0.0
  %246 = vmatprep.subr.mxu0 0.0
  %247 = vmatpush1.msra.mxu0 0.0
  %248 = vmatprep.subr.mxu0 0.0
  %249 = vmatpush1.msra.mxu0 0.0
  %250 = vmatprep.subr.mxu0 0.0
  %251 = vmatpush1.msra.mxu0 0.0
  %252 = vmatprep.subr.mxu0 0.0
  %253 = vmatpush1.msra.mxu0 0.0
  %254 = vmatprep.subr.mxu0 0.0
  %255 = vmatpush1.msra.mxu0 0.0
  %256 = vmatprep.subr.mxu0 0.0
  %257 = vmatpush1.msra.mxu0 0.0
  %258 = vmatprep.subr.mxu0 0.0
  %259 = vmatpush1.msra.mxu0 0.0
  %260 = vmatprep.subr.mxu0 0.0
  %261 = vmatpush1.msra.mxu0 0.0
  %262 = vmatprep.subr.mxu0 0.0
  %263 = vmatpush1.msra.mxu0 0.0
  %264 = vmatprep.subr.mxu0 0.0
  %265 = vmatpush1.msra.mxu0 0.0
  %266 = vmatprep.subr.mxu0 0.0
  %267 = vmatpush1.msra.mxu0 0.0
  %268 = vmatprep.subr.mxu0 0.0
  %269 = vmatpush1.msra.mxu0 0.0
  %270 = vmatprep.subr.mxu0 0.0
  %271 = vmatpush1.msra.mxu0 0.0
  %272 = vmatprep.subr.mxu0 0.0
  %273 = vmatpush1.msra.mxu0 0.0
  %274 = vmatprep.subr.mxu0 0.0
  %275 = vmatpush1.msra.mxu0 0.0
  %276 = vmatprep.subr.mxu0 0.0
  %277 = vmatpush1.msra.mxu0 0.0
  %278 = vmatprep.subr.mxu0 0.0
  %279 = vmatpush1.msra.mxu0 0.0
  %280 = vmatprep.mubr.f32.mxu0 0.0
  %281 = vmatmul.mubr.f32.gmra.mrb[0].mxu0 %v214
  %v282 = vpop.f32.mrb[0].mxu0
  %v283 = vadd.f32 0.0, %v282
  %v284 = vpop.f32.mrb[0].mxu0
  %285 = vdwg.mxu0
  %v287 = vrot.slane %v283, 6
  %v289 = vadd.f32 %v100, %v287
  %v290 = vxor.u32 %v289, 2147483648
  %v291 = vmul.f32 %v290, 1.442695
  %v292 = vpow.pop %v291
  %v293 = vadd.f32 %v292, 1.0
  %v294 = vrcp.pop %v293
  %v295 = vmul.f32 1.0, %v294
  %v297 = vrot.slane %v199, 6
  %v299 = vmul.f32 %v295, %v297
  %v300 = vtanh.pop %v289
  %302 = vrot.lane.b32.xlu0 %v300, 32
  %v303 = vpop.permute.xlu0 %302
  %v305 = vmul.f32 %v295, %v303
  %307 = vrot.lane.b32.xlu0 %v305, 32
  %v308 = vpop.permute.xlu0 %307
  %v310 = vadd.f32 %v299, %v308
  %v311 = vtanh.pop %v310
  %313 = vrot.lane.b32.xlu0 %v311, 32
  %v314 = vpop.permute.xlu0 %313
  %v316 = vmul.f32 %v295, %v314
  %318 = vrot.lane.b32.xlu0 %v316, 64
  %v319 = vpop.permute.xlu0 %318
  %vm321 = vcmask 256002
  %322 = vst.msk [vmem:[#allocation2 - $0x1] sm:$0x4] %vm321, %v319
  %vm323 = vcmask 257027
  %324 = vst.msk [vmem:[#allocation2 + $0x6] sm:$0x8] %vm323, %v319
  %v325 = vrot.slane %v316, 2
  %326 = vrot.lane.b32.xlu0 %v325, 64
  %v327 = vpop.permute.xlu0 %326
  %v328 = vsel %vm26, %v327, 0
  %330 = vmatprep.subr.mxu0 0.0
  %331 = vmatpush1.msra.mxu0 %v15
  %332 = vmatprep.subr.mxu0 0.0
  %333 = vmatpush1.msra.mxu0 %v16
  %334 = vmatprep.subr.mxu0 0.0
  %335 = vmatpush1.msra.mxu0 %v17
  %336 = vmatprep.subr.mxu0 0.0
  %337 = vmatpush1.msra.mxu0 %v18
  %338 = vmatprep.subr.mxu0 0.0
  %339 = vmatpush1.msra.mxu0 0.0
  %340 = vmatprep.subr.mxu0 0.0
  %341 = vmatpush1.msra.mxu0 0.0
  %342 = vmatprep.subr.mxu0 0.0
  %343 = vmatpush1.msra.mxu0 0.0
  %344 = vmatprep.subr.mxu0 0.0
  %345 = vmatpush1.msra.mxu0 0.0
  %346 = vmatprep.subr.mxu0 0.0
  %347 = vmatpush1.msra.mxu0 0.0
  %348 = vmatprep.subr.mxu0 0.0
  %349 = vmatpush1.msra.mxu0 0.0
  %350 = vmatprep.subr.mxu0 0.0
  %351 = vmatpush1.msra.mxu0 0.0
  %352 = vmatprep.subr.mxu0 0.0
  %353 = vmatpush1.msra.mxu0 0.0
  %354 = vmatprep.subr.mxu0 0.0
  %355 = vmatpush1.msra.mxu0 0.0
  %356 = vmatprep.subr.mxu0 0.0
  %357 = vmatpush1.msra.mxu0 0.0
  %358 = vmatprep.subr.mxu0 0.0
  %359 = vmatpush1.msra.mxu0 0.0
  %360 = vmatprep.subr.mxu0 0.0
  %361 = vmatpush1.msra.mxu0 0.0
  %362 = vmatprep.subr.mxu0 0.0
  %363 = vmatpush1.msra.mxu0 0.0
  %364 = vmatprep.subr.mxu0 0.0
  %365 = vmatpush1.msra.mxu0 0.0
  %366 = vmatprep.subr.mxu0 0.0
  %367 = vmatpush1.msra.mxu0 0.0
  %368 = vmatprep.subr.mxu0 0.0
  %369 = vmatpush1.msra.mxu0 0.0
  %370 = vmatprep.subr.mxu0 0.0
  %371 = vmatpush1.msra.mxu0 0.0
  %372 = vmatprep.subr.mxu0 0.0
  %373 = vmatpush1.msra.mxu0 0.0
  %374 = vmatprep.subr.mxu0 0.0
  %375 = vmatpush1.msra.mxu0 0.0
  %376 = vmatprep.subr.mxu0 0.0
  %377 = vmatpush1.msra.mxu0 0.0
  %378 = vmatprep.subr.mxu0 0.0
  %379 = vmatpush1.msra.mxu0 0.0
  %380 = vmatprep.subr.mxu0 0.0
  %381 = vmatpush1.msra.mxu0 0.0
  %382 = vmatprep.subr.mxu0 0.0
  %383 = vmatpush1.msra.mxu0 0.0
  %384 = vmatprep.subr.mxu0 0.0
  %385 = vmatpush1.msra.mxu0 0.0
  %386 = vmatprep.subr.mxu0 0.0
  %387 = vmatpush1.msra.mxu0 0.0
  %388 = vmatprep.subr.mxu0 0.0
  %389 = vmatpush1.msra.mxu0 0.0
  %390 = vmatprep.subr.mxu0 0.0
  %391 = vmatpush1.msra.mxu0 0.0
  %392 = vmatprep.subr.mxu0 0.0
  %393 = vmatpush1.msra.mxu0 0.0
  %394 = vmatprep.mubr.f32.mxu0 0.0
  %395 = vmatmul.mubr.f32.gmra.mrb[0].mxu0 %v328
  %v396 = vpop.f32.mrb[0].mxu0
  %v397 = vadd.f32 0.0, %v396
  %v398 = vpop.f32.mrb[0].mxu0
  %399 = vdwg.mxu0
  %v401 = vrot.slane %v397, 4
  %v403 = vadd.f32 %v100, %v401
  %v404 = vxor.u32 %v403, 2147483648
  %v405 = vmul.f32 %v404, 1.442695
  %v406 = vpow.pop %v405
  %v407 = vadd.f32 %v406, 1.0
  %v408 = vrcp.pop %v407
  %v409 = vmul.f32 1.0, %v408
  %v411 = vrot.slane %v310, 6
  %v413 = vmul.f32 %v409, %v411
  %v414 = vtanh.pop %v403
  %416 = vrot.lane.b32.xlu0 %v414, 32
  %v417 = vpop.permute.xlu0 %416
  %v419 = vmul.f32 %v409, %v417
  %421 = vrot.lane.b32.xlu0 %v419, 32
  %v422 = vpop.permute.xlu0 %421
  %v424 = vadd.f32 %v413, %v422
  %v425 = vtanh.pop %v424
  %427 = vrot.lane.b32.xlu0 %v425, 32
  %v428 = vpop.permute.xlu0 %427
  %v430 = vmul.f32 %v409, %v428
  %432 = vrot.lane.b32.xlu0 %v430, 64
  %v433 = vpop.permute.xlu0 %432
  %vm435 = vcmask 258052
  %436 = vst.msk [vmem:[#allocation2 - $0x2] sm:$0x10] %vm435, %v433
  %vm437 = vcmask 259077
  %438 = vst.msk [vmem:[#allocation2 + $0x5] sm:$0x20] %vm437, %v433
  %v439 = vrot.slane %v430, 4
  %440 = vrot.lane.b32.xlu0 %v439, 64
  %v441 = vpop.permute.xlu0 %440
  %v442 = vsel %vm26, %v441, 0
  %444 = vmatprep.subr.mxu0 0.0
  %445 = vmatpush1.msra.mxu0 %v15
  %446 = vmatprep.subr.mxu0 0.0
  %447 = vmatpush1.msra.mxu0 %v16
  %448 = vmatprep.subr.mxu0 0.0
  %449 = vmatpush1.msra.mxu0 %v17
  %450 = vmatprep.subr.mxu0 0.0
  %451 = vmatpush1.msra.mxu0 %v18
  %452 = vmatprep.subr.mxu0 0.0
  %453 = vmatpush1.msra.mxu0 0.0
  %454 = vmatprep.subr.mxu0 0.0
  %455 = vmatpush1.msra.mxu0 0.0
  %456 = vmatprep.subr.mxu0 0.0
  %457 = vmatpush1.msra.mxu0 0.0
  %458 = vmatprep.subr.mxu0 0.0
  %459 = vmatpush1.msra.mxu0 0.0
  %460 = vmatprep.subr.mxu0 0.0
  %461 = vmatpush1.msra.mxu0 0.0
  %462 = vmatprep.subr.mxu0 0.0
  %463 = vmatpush1.msra.mxu0 0.0
  %464 = vmatprep.subr.mxu0 0.0
  %465 = vmatpush1.msra.mxu0 0.0
  %466 = vmatprep.subr.mxu0 0.0
  %467 = vmatpush1.msra.mxu0 0.0
  %468 = vmatprep.subr.mxu0 0.0
  %469 = vmatpush1.msra.mxu0 0.0
  %470 = vmatprep.subr.mxu0 0.0
  %471 = vmatpush1.msra.mxu0 0.0
  %472 = vmatprep.subr.mxu0 0.0
  %473 = vmatpush1.msra.mxu0 0.0
  %474 = vmatprep.subr.mxu0 0.0
  %475 = vmatpush1.msra.mxu0 0.0
  %476 = vmatprep.subr.mxu0 0.0
  %477 = vmatpush1.msra.mxu0 0.0
  %478 = vmatprep.subr.mxu0 0.0
  %479 = vmatpush1.msra.mxu0 0.0
  %480 = vmatprep.subr.mxu0 0.0
  %481 = vmatpush1.msra.mxu0 0.0
  %482 = vmatprep.subr.mxu0 0.0
  %483 = vmatpush1.msra.mxu0 0.0
  %484 = vmatprep.subr.mxu0 0.0
  %485 = vmatpush1.msra.mxu0 0.0
  %486 = vmatprep.subr.mxu0 0.0
  %487 = vmatpush1.msra.mxu0 0.0
  %488 = vmatprep.subr.mxu0 0.0
  %489 = vmatpush1.msra.mxu0 0.0
  %490 = vmatprep.subr.mxu0 0.0
  %491 = vmatpush1.msra.mxu0 0.0
  %492 = vmatprep.subr.mxu0 0.0
  %493 = vmatpush1.msra.mxu0 0.0
  %494 = vmatprep.subr.mxu0 0.0
  %495 = vmatpush1.msra.mxu0 0.0
  %496 = vmatprep.subr.mxu0 0.0
  %497 = vmatpush1.msra.mxu0 0.0
  %498 = vmatprep.subr.mxu0 0.0
  %499 = vmatpush1.msra.mxu0 0.0
  %500 = vmatprep.subr.mxu0 0.0
  %501 = vmatpush1.msra.mxu0 0.0
  %502 = vmatprep.subr.mxu0 0.0
  %503 = vmatpush1.msra.mxu0 0.0
  %504 = vmatprep.subr.mxu0 0.0
  %505 = vmatpush1.msra.mxu0 0.0
  %506 = vmatprep.subr.mxu0 0.0
  %507 = vmatpush1.msra.mxu0 0.0
  %508 = vmatprep.mubr.f32.mxu0 0.0
  %509 = vmatmul.mubr.f32.gmra.mrb[0].mxu0 %v442
  %v510 = vpop.f32.mrb[0].mxu0
  %v511 = vadd.f32 0.0, %v510
  %v512 = vpop.f32.mrb[0].mxu0
  %513 = vdwg.mxu0
  %v515 = vrot.slane %v511, 2
  %v517 = vadd.f32 %v100, %v515
  %v518 = vxor.u32 %v517, 2147483648
  %v519 = vmul.f32 %v518, 1.442695
  %v520 = vpow.pop %v519
  %v521 = vadd.f32 %v520, 1.0
  %v522 = vrcp.pop %v521
  %v523 = vmul.f32 1.0, %v522
  %v525 = vrot.slane %v424, 6
  %v527 = vmul.f32 %v523, %v525
  %v528 = vtanh.pop %v517
  %530 = vrot.lane.b32.xlu0 %v528, 32
  %v531 = vpop.permute.xlu0 %530
  %v533 = vmul.f32 %v523, %v531
  %535 = vrot.lane.b32.xlu0 %v533, 32
  %v536 = vpop.permute.xlu0 %535
  %v538 = vadd.f32 %v527, %v536
  %v539 = vtanh.pop %v538
  %541 = vrot.lane.b32.xlu0 %v539, 32
  %v542 = vpop.permute.xlu0 %541
  %v544 = vmul.f32 %v523, %v542
  %546 = vrot.lane.b32.xlu0 %v544, 64
  %v547 = vpop.permute.xlu0 %546
  %vm549 = vcmask 260102
  %550 = vst.msk [vmem:[#allocation2 - $0x3] sm:$0x40] %vm549, %v547
  %vm551 = vcmask 261127
  %552 = vst.msk [vmem:[#allocation2 + $0x4] sm:$0x80] %vm551, %v547
  %v553 = vrot.slane %v544, 6
  %554 = vrot.lane.b32.xlu0 %v553, 64
  %v555 = vpop.permute.xlu0 %554
  %v556 = vsel %vm26, %v555, 0
  %558 = vmatprep.subr.mxu0 0.0
  %559 = vmatpush1.msra.mxu0 %v15
  %560 = vmatprep.subr.mxu0 0.0
  %561 = vmatpush1.msra.mxu0 %v16
  %562 = vmatprep.subr.mxu0 0.0
  %563 = vmatpush1.msra.mxu0 %v17
  %564 = vmatprep.subr.mxu0 0.0
  %565 = vmatpush1.msra.mxu0 %v18
  %566 = vmatprep.subr.mxu0 0.0
  %567 = vmatpush1.msra.mxu0 0.0
  %568 = vmatprep.subr.mxu0 0.0
  %569 = vmatpush1.msra.mxu0 0.0
  %570 = vmatprep.subr.mxu0 0.0
  %571 = vmatpush1.msra.mxu0 0.0
  %572 = vmatprep.subr.mxu0 0.0
  %573 = vmatpush1.msra.mxu0 0.0
  %574 = vmatprep.subr.mxu0 0.0
  %575 = vmatpush1.msra.mxu0 0.0
  %576 = vmatprep.subr.mxu0 0.0
  %577 = vmatpush1.msra.mxu0 0.0
  %578 = vmatprep.subr.mxu0 0.0
  %579 = vmatpush1.msra.mxu0 0.0
  %580 = vmatprep.subr.mxu0 0.0
  %581 = vmatpush1.msra.mxu0 0.0
  %582 = vmatprep.subr.mxu0 0.0
  %583 = vmatpush1.msra.mxu0 0.0
  %584 = vmatprep.subr.mxu0 0.0
  %585 = vmatpush1.msra.mxu0 0.0
  %586 = vmatprep.subr.mxu0 0.0
  %587 = vmatpush1.msra.mxu0 0.0
  %588 = vmatprep.subr.mxu0 0.0
  %589 = vmatpush1.msra.mxu0 0.0
  %590 = vmatprep.subr.mxu0 0.0
  %591 = vmatpush1.msra.mxu0 0.0
  %592 = vmatprep.subr.mxu0 0.0
  %593 = vmatpush1.msra.mxu0 0.0
  %594 = vmatprep.subr.mxu0 0.0
  %595 = vmatpush1.msra.mxu0 0.0
  %596 = vmatprep.subr.mxu0 0.0
  %597 = vmatpush1.msra.mxu0 0.0
  %598 = vmatprep.subr.mxu0 0.0
  %599 = vmatpush1.msra.mxu0 0.0
  %600 = vmatprep.subr.mxu0 0.0
  %601 = vmatpush1.msra.mxu0 0.0
  %602 = vmatprep.subr.mxu0 0.0
  %603 = vmatpush1.msra.mxu0 0.0
  %604 = vmatprep.subr.mxu0 0.0
  %605 = vmatpush1.msra.mxu0 0.0
  %606 = vmatprep.subr.mxu0 0.0
  %607 = vmatpush1.msra.mxu0 0.0
  %608 = vmatprep.subr.mxu0 0.0
  %609 = vmatpush1.msra.mxu0 0.0
  %610 = vmatprep.subr.mxu0 0.0
  %611 = vmatpush1.msra.mxu0 0.0
  %612 = vmatprep.subr.mxu0 0.0
  %613 = vmatpush1.msra.mxu0 0.0
  %614 = vmatprep.subr.mxu0 0.0
  %615 = vmatpush1.msra.mxu0 0.0
  %616 = vmatprep.subr.mxu0 0.0
  %617 = vmatpush1.msra.mxu0 0.0
  %618 = vmatprep.subr.mxu0 0.0
  %619 = vmatpush1.msra.mxu0 0.0
  %620 = vmatprep.subr.mxu0 0.0
  %621 = vmatpush1.msra.mxu0 0.0
  %622 = vmatprep.mubr.f32.mxu0 0.0
  %623 = vmatmul.mubr.f32.gmra.mrb[0].mxu0 %v556
  %v624 = vpop.f32.mrb[0].mxu0
  %v625 = vadd.f32 0.0, %v624
  %v626 = vpop.f32.mrb[0].mxu0
  %627 = vdwg.mxu0
  %v628 = vadd.f32 %v105, %v625
  %v629 = vxor.u32 %v628, 2147483648
  %v630 = vmul.f32 %v629, 1.442695
  %v631 = vpow.pop %v630
  %v632 = vadd.f32 %v631, 1.0
  %v633 = vrcp.pop %v632
  %v634 = vmul.f32 1.0, %v633
  %v636 = vrot.slane %v538, 6
  %v638 = vmul.f32 %v634, %v636
  %v639 = vtanh.pop %v628
  %641 = vrot.lane.b32.xlu0 %v639, 32
  %v642 = vpop.permute.xlu0 %641
  %v644 = vmul.f32 %v634, %v642
  %646 = vrot.lane.b32.xlu0 %v644, 32
  %v647 = vpop.permute.xlu0 %646
  %v649 = vadd.f32 %v638, %v647
  %v650 = vtanh.pop %v649
  %652 = vrot.lane.b32.xlu0 %v650, 32
  %v653 = vpop.permute.xlu0 %652
  %v655 = vmul.f32 %v634, %v653
  %657 = vrot.lane.b32.xlu0 %v655, 64
  %v658 = vpop.permute.xlu0 %657
  %660 = vst.msk [vmem:[#allocation2 + $0x4] sm:$0x1] %vm210, %v658
  %661 = vst.msk [vmem:[#allocation2 + $0xb] sm:$0x2] %vm212, %v658
  %v662 = vsel %vm26, %v658, 0
  %664 = vmatprep.subr.mxu0 0.0
  %665 = vmatpush1.msra.mxu0 %v15
  %666 = vmatprep.subr.mxu0 0.0
  %667 = vmatpush1.msra.mxu0 %v16
  %668 = vmatprep.subr.mxu0 0.0
  %669 = vmatpush1.msra.mxu0 %v17
  %670 = vmatprep.subr.mxu0 0.0
  %671 = vmatpush1.msra.mxu0 %v18
  %672 = vmatprep.subr.mxu0 0.0
  %673 = vmatpush1.msra.mxu0 0.0
  %674 = vmatprep.subr.mxu0 0.0
  %675 = vmatpush1.msra.mxu0 0.0
  %676 = vmatprep.subr.mxu0 0.0
  %677 = vmatpush1.msra.mxu0 0.0
  %678 = vmatprep.subr.mxu0 0.0
  %679 = vmatpush1.msra.mxu0 0.0
  %680 = vmatprep.subr.mxu0 0.0
  %681 = vmatpush1.msra.mxu0 0.0
  %682 = vmatprep.subr.mxu0 0.0
  %683 = vmatpush1.msra.mxu0 0.0
  %684 = vmatprep.subr.mxu0 0.0
  %685 = vmatpush1.msra.mxu0 0.0
  %686 = vmatprep.subr.mxu0 0.0
  %687 = vmatpush1.msra.mxu0 0.0
  %688 = vmatprep.subr.mxu0 0.0
  %689 = vmatpush1.msra.mxu0 0.0
  %690 = vmatprep.subr.mxu0 0.0
  %691 = vmatpush1.msra.mxu0 0.0
  %692 = vmatprep.subr.mxu0 0.0
  %693 = vmatpush1.msra.mxu0 0.0
  %694 = vmatprep.subr.mxu0 0.0
  %695 = vmatpush1.msra.mxu0 0.0
  %696 = vmatprep.subr.mxu0 0.0
  %697 = vmatpush1.msra.mxu0 0.0
  %698 = vmatprep.subr.mxu0 0.0
  %699 = vmatpush1.msra.mxu0 0.0
  %700 = vmatprep.subr.mxu0 0.0
  %701 = vmatpush1.msra.mxu0 0.0
  %702 = vmatprep.subr.mxu0 0.0
  %703 = vmatpush1.msra.mxu0 0.0
  %704 = vmatprep.subr.mxu0 0.0
  %705 = vmatpush1.msra.mxu0 0.0
  %706 = vmatprep.subr.mxu0 0.0
  %707 = vmatpush1.msra.mxu0 0.0
  %708 = vmatprep.subr.mxu0 0.0
  %709 = vmatpush1.msra.mxu0 0.0
  %710 = vmatprep.subr.mxu0 0.0
  %711 = vmatpush1.msra.mxu0 0.0
  %712 = vmatprep.subr.mxu0 0.0
  %713 = vmatpush1.msra.mxu0 0.0
  %714 = vmatprep.subr.mxu0 0.0
  %715 = vmatpush1.msra.mxu0 0.0
  %716 = vmatprep.subr.mxu0 0.0
  %717 = vmatpush1.msra.mxu0 0.0
  %718 = vmatprep.subr.mxu0 0.0
  %719 = vmatpush1.msra.mxu0 0.0
  %720 = vmatprep.subr.mxu0 0.0
  %721 = vmatpush1.msra.mxu0 0.0
  %722 = vmatprep.subr.mxu0 0.0
  %723 = vmatpush1.msra.mxu0 0.0
  %724 = vmatprep.subr.mxu0 0.0
  %725 = vmatpush1.msra.mxu0 0.0
  %726 = vmatprep.subr.mxu0 0.0
  %727 = vmatpush1.msra.mxu0 0.0
  %728 = vmatprep.mubr.f32.mxu0 0.0
  %729 = vmatmul.mubr.f32.gmra.mrb[0].mxu0 %v662
  %v730 = vpop.f32.mrb[0].mxu0
  %v731 = vadd.f32 0.0, %v730
  %v732 = vpop.f32.mrb[0].mxu0
  %733 = vdwg.mxu0
  %v735 = vrot.slane %v731, 6
  %v737 = vadd.f32 %v105, %v735
  %v738 = vxor.u32 %v737, 2147483648
  %v739 = vmul.f32 %v738, 1.442695
  %v740 = vpow.pop %v739
  %v741 = vadd.f32 %v740, 1.0
  %v742 = vrcp.pop %v741
  %v743 = vmul.f32 1.0, %v742
  %v745 = vrot.slane %v649, 6
  %v747 = vmul.f32 %v743, %v745
  %v748 = vtanh.pop %v737
  %750 = vrot.lane.b32.xlu0 %v748, 32
  %v751 = vpop.permute.xlu0 %750
  %v753 = vmul.f32 %v743, %v751
  %755 = vrot.lane.b32.xlu0 %v753, 32
  %v756 = vpop.permute.xlu0 %755
  %v758 = vadd.f32 %v747, %v756
  %v759 = vtanh.pop %v758
  %761 = vrot.lane.b32.xlu0 %v759, 32
  %v762 = vpop.permute.xlu0 %761
  %v764 = vmul.f32 %v743, %v762
  %766 = vrot.lane.b32.xlu0 %v764, 64
  %v767 = vpop.permute.xlu0 %766
  %769 = vst.msk [vmem:[#allocation2 + $0x3] sm:$0x4] %vm321, %v767
  %770 = vst.msk [vmem:[#allocation2 + $0xa] sm:$0x8] %vm323, %v767
  %v771 = vrot.slane %v764, 2
  %772 = vrot.lane.b32.xlu0 %v771, 64
  %v773 = vpop.permute.xlu0 %772
  %v774 = vsel %vm26, %v773, 0
  %776 = vmatprep.subr.mxu0 0.0
  %777 = vmatpush1.msra.mxu0 %v15
  %778 = vmatprep.subr.mxu0 0.0
  %779 = vmatpush1.msra.mxu0 %v16
  %780 = vmatprep.subr.mxu0 0.0
  %781 = vmatpush1.msra.mxu0 %v17
  %782 = vmatprep.subr.mxu0 0.0
  %783 = vmatpush1.msra.mxu0 %v18
  %784 = vmatprep.subr.mxu0 0.0
  %785 = vmatpush1.msra.mxu0 0.0
  %786 = vmatprep.subr.mxu0 0.0
  %787 = vmatpush1.msra.mxu0 0.0
  %788 = vmatprep.subr.mxu0 0.0
  %789 = vmatpush1.msra.mxu0 0.0
  %790 = vmatprep.subr.mxu0 0.0
  %791 = vmatpush1.msra.mxu0 0.0
  %792 = vmatprep.subr.mxu0 0.0
  %793 = vmatpush1.msra.mxu0 0.0
  %794 = vmatprep.subr.mxu0 0.0
  %795 = vmatpush1.msra.mxu0 0.0
  %796 = vmatprep.subr.mxu0 0.0
  %797 = vmatpush1.msra.mxu0 0.0
  %798 = vmatprep.subr.mxu0 0.0
  %799 = vmatpush1.msra.mxu0 0.0
  %800 = vmatprep.subr.mxu0 0.0
  %801 = vmatpush1.msra.mxu0 0.0
  %802 = vmatprep.subr.mxu0 0.0
  %803 = vmatpush1.msra.mxu0 0.0
  %804 = vmatprep.subr.mxu0 0.0
  %805 = vmatpush1.msra.mxu0 0.0
  %806 = vmatprep.subr.mxu0 0.0
  %807 = vmatpush1.msra.mxu0 0.0
  %808 = vmatprep.subr.mxu0 0.0
  %809 = vmatpush1.msra.mxu0 0.0
  %810 = vmatprep.subr.mxu0 0.0
  %811 = vmatpush1.msra.mxu0 0.0
  %812 = vmatprep.subr.mxu0 0.0
  %813 = vmatpush1.msra.mxu0 0.0
  %814 = vmatprep.subr.mxu0 0.0
  %815 = vmatpush1.msra.mxu0 0.0
  %816 = vmatprep.subr.mxu0 0.0
  %817 = vmatpush1.msra.mxu0 0.0
  %818 = vmatprep.subr.mxu0 0.0
  %819 = vmatpush1.msra.mxu0 0.0
  %820 = vmatprep.subr.mxu0 0.0
  %821 = vmatpush1.msra.mxu0 0.0
  %822 = vmatprep.subr.mxu0 0.0
  %823 = vmatpush1.msra.mxu0 0.0
  %824 = vmatprep.subr.mxu0 0.0
  %825 = vmatpush1.msra.mxu0 0.0
  %826 = vmatprep.subr.mxu0 0.0
  %827 = vmatpush1.msra.mxu0 0.0
  %828 = vmatprep.subr.mxu0 0.0
  %829 = vmatpush1.msra.mxu0 0.0
  %830 = vmatprep.subr.mxu0 0.0
  %831 = vmatpush1.msra.mxu0 0.0
  %832 = vmatprep.subr.mxu0 0.0
  %833 = vmatpush1.msra.mxu0 0.0
  %834 = vmatprep.subr.mxu0 0.0
  %835 = vmatpush1.msra.mxu0 0.0
  %836 = vmatprep.subr.mxu0 0.0
  %837 = vmatpush1.msra.mxu0 0.0
  %838 = vmatprep.subr.mxu0 0.0
  %839 = vmatpush1.msra.mxu0 0.0
  %840 = vmatprep.mubr.f32.mxu0 0.0
  %841 = vmatmul.mubr.f32.gmra.mrb[0].mxu0 %v774
  %v842 = vpop.f32.mrb[0].mxu0
  %v843 = vadd.f32 0.0, %v842
  %v844 = vpop.f32.mrb[0].mxu0
  %845 = vdwg.mxu0
  %v847 = vrot.slane %v843, 4
  %v849 = vadd.f32 %v105, %v847
  %v850 = vxor.u32 %v849, 2147483648
  %v851 = vmul.f32 %v850, 1.442695
  %v852 = vpow.pop %v851
  %v853 = vadd.f32 %v852, 1.0
  %v854 = vrcp.pop %v853
  %v855 = vmul.f32 1.0, %v854
  %v857 = vrot.slane %v758, 6
  %v859 = vmul.f32 %v855, %v857
  %v860 = vtanh.pop %v849
  %862 = vrot.lane.b32.xlu0 %v860, 32
  %v863 = vpop.permute.xlu0 %862
  %v865 = vmul.f32 %v855, %v863
  %867 = vrot.lane.b32.xlu0 %v865, 32
  %v868 = vpop.permute.xlu0 %867
  %v870 = vadd.f32 %v859, %v868
  %v871 = vtanh.pop %v870
  %873 = vrot.lane.b32.xlu0 %v871, 32
  %v874 = vpop.permute.xlu0 %873
  %v876 = vmul.f32 %v855, %v874
  %878 = vrot.lane.b32.xlu0 %v876, 64
  %v879 = vpop.permute.xlu0 %878
  %881 = vst.msk [vmem:[#allocation2 + $0x2] sm:$0x10] %vm435, %v879
  %882 = vst.msk [vmem:[#allocation2 + $0x9] sm:$0x20] %vm437, %v879
  %v883 = vrot.slane %v876, 4
  %884 = vrot.lane.b32.xlu0 %v883, 64
  %v885 = vpop.permute.xlu0 %884
  %v886 = vsel %vm26, %v885, 0
  %888 = vmatprep.subr.mxu0 0.0
  %889 = vmatpush1.msra.mxu0 %v15
  %890 = vmatprep.subr.mxu0 0.0
  %891 = vmatpush1.msra.mxu0 %v16
  %892 = vmatprep.subr.mxu0 0.0
  %893 = vmatpush1.msra.mxu0 %v17
  %894 = vmatprep.subr.mxu0 0.0
  %895 = vmatpush1.msra.mxu0 %v18
  %896 = vmatprep.subr.mxu0 0.0
  %897 = vmatpush1.msra.mxu0 0.0
  %898 = vmatprep.subr.mxu0 0.0
  %899 = vmatpush1.msra.mxu0 0.0
  %900 = vmatprep.subr.mxu0 0.0
  %901 = vmatpush1.msra.mxu0 0.0
  %902 = vmatprep.subr.mxu0 0.0
  %903 = vmatpush1.msra.mxu0 0.0
  %904 = vmatprep.subr.mxu0 0.0
  %905 = vmatpush1.msra.mxu0 0.0
  %906 = vmatprep.subr.mxu0 0.0
  %907 = vmatpush1.msra.mxu0 0.0
  %908 = vmatprep.subr.mxu0 0.0
  %909 = vmatpush1.msra.mxu0 0.0
  %910 = vmatprep.subr.mxu0 0.0
  %911 = vmatpush1.msra.mxu0 0.0
  %912 = vmatprep.subr.mxu0 0.0
  %913 = vmatpush1.msra.mxu0 0.0
  %914 = vmatprep.subr.mxu0 0.0
  %915 = vmatpush1.msra.mxu0 0.0
  %916 = vmatprep.subr.mxu0 0.0
  %917 = vmatpush1.msra.mxu0 0.0
  %918 = vmatprep.subr.mxu0 0.0
  %919 = vmatpush1.msra.mxu0 0.0
  %920 = vmatprep.subr.mxu0 0.0
  %921 = vmatpush1.msra.mxu0 0.0
  %922 = vmatprep.subr.mxu0 0.0
  %923 = vmatpush1.msra.mxu0 0.0
  %924 = vmatprep.subr.mxu0 0.0
  %925 = vmatpush1.msra.mxu0 0.0
  %926 = vmatprep.subr.mxu0 0.0
  %927 = vmatpush1.msra.mxu0 0.0
  %928 = vmatprep.subr.mxu0 0.0
  %929 = vmatpush1.msra.mxu0 0.0
  %930 = vmatprep.subr.mxu0 0.0
  %931 = vmatpush1.msra.mxu0 0.0
  %932 = vmatprep.subr.mxu0 0.0
  %933 = vmatpush1.msra.mxu0 0.0
  %934 = vmatprep.subr.mxu0 0.0
  %935 = vmatpush1.msra.mxu0 0.0
  %936 = vmatprep.subr.mxu0 0.0
  %937 = vmatpush1.msra.mxu0 0.0
  %938 = vmatprep.subr.mxu0 0.0
  %939 = vmatpush1.msra.mxu0 0.0
  %940 = vmatprep.subr.mxu0 0.0
  %941 = vmatpush1.msra.mxu0 0.0
  %942 = vmatprep.subr.mxu0 0.0
  %943 = vmatpush1.msra.mxu0 0.0
  %944 = vmatprep.subr.mxu0 0.0
  %945 = vmatpush1.msra.mxu0 0.0
  %946 = vmatprep.subr.mxu0 0.0
  %947 = vmatpush1.msra.mxu0 0.0
  %948 = vmatprep.subr.mxu0 0.0
  %949 = vmatpush1.msra.mxu0 0.0
  %950 = vmatprep.subr.mxu0 0.0
  %951 = vmatpush1.msra.mxu0 0.0
  %952 = vmatprep.mubr.f32.mxu0 0.0
  %953 = vmatmul.mubr.f32.gmra.mrb[0].mxu0 %v886
  %v954 = vpop.f32.mrb[0].mxu0
  %v955 = vadd.f32 0.0, %v954
  %v956 = vpop.f32.mrb[0].mxu0
  %957 = vdwg.mxu0
  %v959 = vrot.slane %v955, 2
  %v961 = vadd.f32 %v105, %v959
  %v962 = vxor.u32 %v961, 2147483648
  %v963 = vmul.f32 %v962, 1.442695
  %v964 = vpow.pop %v963
  %v965 = vadd.f32 %v964, 1.0
  %v966 = vrcp.pop %v965
  %v967 = vmul.f32 1.0, %v966
  %v969 = vrot.slane %v870, 6
  %v971 = vmul.f32 %v967, %v969
  %v972 = vtanh.pop %v961
  %974 = vrot.lane.b32.xlu0 %v972, 32
  %v975 = vpop.permute.xlu0 %974
  %v977 = vmul.f32 %v967, %v975
  %979 = vrot.lane.b32.xlu0 %v977, 32
  %v980 = vpop.permute.xlu0 %979
  %v982 = vadd.f32 %v971, %v980
  %v983 = vtanh.pop %v982
  %985 = vrot.lane.b32.xlu0 %v983, 32
  %v986 = vpop.permute.xlu0 %985
  %v988 = vmul.f32 %v967, %v986
  %990 = vrot.lane.b32.xlu0 %v988, 64
  %v991 = vpop.permute.xlu0 %990
  %993 = vst.msk [vmem:[#allocation2 + $0x1] sm:$0x40] %vm549, %v991
  %994 = vst.msk [vmem:[#allocation2 + $0x8] sm:$0x80] %vm551, %v991
  %v995 = vld [vmem:[%s0 + $0x18] sm:$0xff]
  %v996 = vld [vmem:[%s0 + $0x20] sm:$0xff]
  %v997 = vld [vmem:[#allocation2] sm:$0xff]
  %v998 = vld [vmem:[#allocation2 + $0x8] sm:$0xff]
  %v999 = vmul.f32 %v997, %v995
  %v1000 = vmul.f32 %v998, %v996
  %v1001 = vld [vmem:[%s1 + $0x48] sm:$0xff]
  %v1002 = vld [vmem:[%s1 + $0x50] sm:$0xff]
  %v1003 = vld [vmem:[%s1 + $0x58] sm:$0xff]
  %v1004 = vld [vmem:[%s1 + $0x60] sm:$0xff]
  %v1005 = vld [vmem:[%s1 + $0x68] sm:$0x1]
  %v1006 = vld [vmem:[%s1 + $0x69] sm:$0x1]
  %v1007 = vlaneseq
  %v1008 = vshrl.u32 %v1007, 7
  %v1009 = vsub.s32 0, %v1008
  %v1010 = vrot.slane %v1005, %v1009
  %v1012 = vsel %vm26, %v999, 0
  %v1015 = vsel %vm26, %v1000, 0
  %1017 = vmatprep.subr.mxu0 0.0
  %1018 = vmatpush1.msra.mxu0 %v1001
  %1019 = vmatprep.subr.mxu0 0.0
  %1020 = vmatpush1.msra.mxu0 %v1002
  %1021 = vmatprep.subr.mxu0 0.0
  %1022 = vmatpush1.msra.mxu0 %v1003
  %1023 = vmatprep.subr.mxu0 0.0
  %1024 = vmatpush1.msra.mxu0 %v1004
  %1025 = vmatprep.subr.mxu0 0.0
  %1026 = vmatpush1.msra.mxu0 0.0
  %1027 = vmatprep.subr.mxu0 0.0
  %1028 = vmatpush1.msra.mxu0 0.0
  %1029 = vmatprep.subr.mxu0 0.0
  %1030 = vmatpush1.msra.mxu0 0.0
  %1031 = vmatprep.subr.mxu0 0.0
  %1032 = vmatpush1.msra.mxu0 0.0
  %1033 = vmatprep.subr.mxu0 0.0
  %1034 = vmatpush1.msra.mxu0 0.0
  %1035 = vmatprep.subr.mxu0 0.0
  %1036 = vmatpush1.msra.mxu0 0.0
  %1037 = vmatprep.subr.mxu0 0.0
  %1038 = vmatpush1.msra.mxu0 0.0
  %1039 = vmatprep.subr.mxu0 0.0
  %1040 = vmatpush1.msra.mxu0 0.0
  %1041 = vmatprep.subr.mxu0 0.0
  %1042 = vmatpush1.msra.mxu0 0.0
  %1043 = vmatprep.subr.mxu0 0.0
  %1044 = vmatpush1.msra.mxu0 0.0
  %1045 = vmatprep.subr.mxu0 0.0
  %1046 = vmatpush1.msra.mxu0 0.0
  %1047 = vmatprep.subr.mxu0 0.0
  %1048 = vmatpush1.msra.mxu0 0.0
  %1049 = vmatprep.subr.mxu0 0.0
  %1050 = vmatpush1.msra.mxu0 0.0
  %1051 = vmatprep.subr.mxu0 0.0
  %1052 = vmatpush1.msra.mxu0 0.0
  %1053 = vmatprep.subr.mxu0 0.0
  %1054 = vmatpush1.msra.mxu0 0.0
  %1055 = vmatprep.subr.mxu0 0.0
  %1056 = vmatpush1.msra.mxu0 0.0
  %1057 = vmatprep.subr.mxu0 0.0
  %1058 = vmatpush1.msra.mxu0 0.0
  %1059 = vmatprep.subr.mxu0 0.0
  %1060 = vmatpush1.msra.mxu0 0.0
  %1061 = vmatprep.subr.mxu0 0.0
  %1062 = vmatpush1.msra.mxu0 0.0
  %1063 = vmatprep.subr.mxu0 0.0
  %1064 = vmatpush1.msra.mxu0 0.0
  %1065 = vmatprep.subr.mxu0 0.0
  %1066 = vmatpush1.msra.mxu0 0.0
  %1067 = vmatprep.subr.mxu0 0.0
  %1068 = vmatpush1.msra.mxu0 0.0
  %1069 = vmatprep.subr.mxu0 0.0
  %1070 = vmatpush1.msra.mxu0 0.0
  %1071 = vmatprep.subr.mxu0 0.0
  %1072 = vmatpush1.msra.mxu0 0.0
  %1073 = vmatprep.subr.mxu0 0.0
  %1074 = vmatpush1.msra.mxu0 0.0
  %1075 = vmatprep.subr.mxu0 0.0
  %1076 = vmatpush1.msra.mxu0 0.0
  %1077 = vmatprep.subr.mxu0 0.0
  %1078 = vmatpush1.msra.mxu0 0.0
  %1079 = vmatprep.subr.mxu0 0.0
  %1080 = vmatpush1.msra.mxu0 0.0
  %1081 = vmatprep.mubr.f32.mxu0 0.0
  %1082 = vmatmul.mubr.f32.gmra.mrb[0].mxu0 %v1012
  %v1083 = vpop.f32.mrb[0].mxu0
  %v1084 = vadd.f32 %v1010, %v1083
  %v1085 = vpop.f32.mrb[0].mxu0
  %1086 = vmatprep.mubr.f32.mxu0 0.0
  %1087 = vmatmul.mubr.f32.gmra.mrb[0].mxu0 %v1015
  %v1088 = vpop.f32.mrb[0].mxu0
  %v1089 = vadd.f32 %v1010, %v1088
  %v1090 = vpop.f32.mrb[0].mxu0
  %1091 = vdwg.mxu0
  %v1092 = vld [vmem:[%s1 + $0x41] sm:$0x1]
  %v1093 = vld [vmem:[%s1 + $0x42] sm:$0x1]
  %v1095 = vsel %vm26, %v1092, 0
  %1097 = vmatprep.subr.mxu0 0.0
  %1098 = vmatpush1.xpose.msra.mxu0 %v1012
  %1099 = vmatprep.subr.mxu0 0.0
  %1100 = vmatpush1.xpose.msra.mxu0 %v1015
  %1101 = vmatprep.subr.mxu0 0.0
  %1102 = vmatpush1.xpose.msra.mxu0 0.0
  %1103 = vmatprep.subr.mxu0 0.0
  %1104 = vmatpush1.xpose.msra.mxu0 0.0
  %1105 = vmatprep.subr.mxu0 0.0
  %1106 = vmatpush1.xpose.msra.mxu0 0.0
  %1107 = vmatprep.subr.mxu0 0.0
  %1108 = vmatpush1.xpose.msra.mxu0 0.0
  %1109 = vmatprep.subr.mxu0 0.0
  %1110 = vmatpush1.xpose.msra.mxu0 0.0
  %1111 = vmatprep.subr.mxu0 0.0
  %1112 = vmatpush1.xpose.msra.mxu0 0.0
  %1113 = vmatprep.subr.mxu0 0.0
  %1114 = vmatpush1.xpose.msra.mxu0 0.0
  %1115 = vmatprep.subr.mxu0 0.0
  %1116 = vmatpush1.xpose.msra.mxu0 0.0
  %1117 = vmatprep.subr.mxu0 0.0
  %1118 = vmatpush1.xpose.msra.mxu0 0.0
  %1119 = vmatprep.subr.mxu0 0.0
  %1120 = vmatpush1.xpose.msra.mxu0 0.0
  %1121 = vmatprep.subr.mxu0 0.0
  %1122 = vmatpush1.xpose.msra.mxu0 0.0
  %1123 = vmatprep.subr.mxu0 0.0
  %1124 = vmatpush1.xpose.msra.mxu0 0.0
  %1125 = vmatprep.subr.mxu0 0.0
  %1126 = vmatpush1.xpose.msra.mxu0 0.0
  %1127 = vmatprep.subr.mxu0 0.0
  %1128 = vmatpush1.xpose.msra.mxu0 0.0
  %1129 = vmatprep.subr.mxu0 0.0
  %1130 = vmatpush1.xpose.msra.mxu0 0.0
  %1131 = vmatprep.subr.mxu0 0.0
  %1132 = vmatpush1.xpose.msra.mxu0 0.0
  %1133 = vmatprep.subr.mxu0 0.0
  %1134 = vmatpush1.xpose.msra.mxu0 0.0
  %1135 = vmatprep.subr.mxu0 0.0
  %1136 = vmatpush1.xpose.msra.mxu0 0.0
  %1137 = vmatprep.subr.mxu0 0.0
  %1138 = vmatpush1.xpose.msra.mxu0 0.0
  %1139 = vmatprep.subr.mxu0 0.0
  %1140 = vmatpush1.xpose.msra.mxu0 0.0
  %1141 = vmatprep.subr.mxu0 0.0
  %1142 = vmatpush1.xpose.msra.mxu0 0.0
  %1143 = vmatprep.subr.mxu0 0.0
  %1144 = vmatpush1.xpose.msra.mxu0 0.0
  %1145 = vmatprep.subr.mxu0 0.0
  %1146 = vmatpush1.xpose.msra.mxu0 0.0
  %1147 = vmatprep.subr.mxu0 0.0
  %1148 = vmatpush1.xpose.msra.mxu0 0.0
  %1149 = vmatprep.subr.mxu0 0.0
  %1150 = vmatpush1.xpose.msra.mxu0 0.0
  %1151 = vmatprep.subr.mxu0 0.0
  %1152 = vmatpush1.xpose.msra.mxu0 0.0
  %1153 = vmatprep.subr.mxu0 0.0
  %1154 = vmatpush1.xpose.msra.mxu0 0.0
  %1155 = vmatprep.subr.mxu0 0.0
  %1156 = vmatpush1.xpose.msra.mxu0 0.0
  %1157 = vmatprep.subr.mxu0 0.0
  %1158 = vmatpush1.xpose.msra.mxu0 0.0
  %1159 = vmatprep.subr.mxu0 0.0
  %1160 = vmatpush1.xpose.msra.mxu0 0.0
  %1161 = vmatprep.mubr.f32.mxu0 0.0
  %1162 = vmatmul.mubr.f32.gmra.mrb[0].mxu0 %v1095
  %v1163 = vpop.f32.mrb[0].mxu0
  %v1164 = vadd.f32 0.0, %v1163
  %v1165 = vpop.f32.mrb[0].mxu0
  %1166 = vdwg.mxu0
  %v1167 = vld [vmem:[%s0 + $0x10] sm:$0xff]
  %v1168 = vlaneseq
  %v1169 = vshrl.u32 %v1168, 7
  %v1170 = vsub.s32 0, %v1169
  %v1171 = vrot.slane %v1093, %v1170
  %v1172 = vmul.f32 %v1167, %v1171
  %v1173 = vsel %vm26, %v1172, 0.0
  %1174 = vadd.xlane.f32.xlu0 %v1173
  %v1175 = vpop.xlane.xlu0 %1174
  %v1176 = vlaneseq
  %v1177 = vshrl.u32 %v1176, 7
  %v1178 = vsub.s32 0, %v1177
  %v1179 = vrot.slane %v1164, %v1178
  %v1180 = vadd.f32 %v1175, %v1179
  %1181 = vrot.lane.b32.xlu0 %v1092, 96
  %v1182 = vpop.permute.xlu0 %1181
  %s1183 = vtos %v1182
  %v1184 = vstv %s1183
  %v1186 = vadd.f32 %v1180, %v1184
  %v1187 = vtanh.pop %v1186
  %v1188 = vmul.f32 %v1187, 1.442695
  %v1189 = vpow.pop %v1188
  %vm1190 = vcmask 60416
  %v1191 = vsel %vm1190, %v1189, 0.0
  %1192 = vadd.xlane.f32.xlu0 %v1191
  %v1193 = vpop.xlane.xlu0 %1192
  %v1194 = vrcp.pop %v1193
  %v1195 = vmul.f32 %v1189, %v1194
  %v1196 = vlaneseq
  %v1197 = vshrl.u32 %v1196, 7
  %v1198 = vsub.s32 0, %v1197
  %v1199 = vrot.slane %v1006, %v1198
  %vm1200 = vcmask 64512
  %v1202 = vsel %vm1200, %v1195, 0
  %1204 = vmatprep.subr.mxu0 0.0
  %1205 = vmatpush1.msra.mxu0 %v1084
  %1206 = vmatprep.subr.mxu0 0.0
  %1207 = vmatpush1.msra.mxu0 0.0
  %1208 = vmatprep.subr.mxu0 0.0
  %1209 = vmatpush1.msra.mxu0 0.0
  %1210 = vmatprep.subr.mxu0 0.0
  %1211 = vmatpush1.msra.mxu0 0.0
  %1212 = vmatprep.subr.mxu0 0.0
  %1213 = vmatpush1.msra.mxu0 0.0
  %1214 = vmatprep.subr.mxu0 0.0
  %1215 = vmatpush1.msra.mxu0 0.0
  %1216 = vmatprep.subr.mxu0 0.0
  %1217 = vmatpush1.msra.mxu0 0.0
  %1218 = vmatprep.subr.mxu0 0.0
  %1219 = vmatpush1.msra.mxu0 0.0
  %1220 = vmatprep.subr.mxu0 0.0
  %1221 = vmatpush1.msra.mxu0 0.0
  %1222 = vmatprep.subr.mxu0 0.0
  %1223 = vmatpush1.msra.mxu0 0.0
  %1224 = vmatprep.subr.mxu0 0.0
  %1225 = vmatpush1.msra.mxu0 0.0
  %1226 = vmatprep.subr.mxu0 0.0
  %1227 = vmatpush1.msra.mxu0 0.0
  %1228 = vmatprep.subr.mxu0 0.0
  %1229 = vmatpush1.msra.mxu0 0.0
  %1230 = vmatprep.subr.mxu0 0.0
  %1231 = vmatpush1.msra.mxu0 0.0
  %1232 = vmatprep.subr.mxu0 0.0
  %1233 = vmatpush1.msra.mxu0 0.0
  %1234 = vmatprep.subr.mxu0 0.0
  %1235 = vmatpush1.msra.mxu0 0.0
  %1236 = vmatprep.subr.mxu0 0.0
  %1237 = vmatpush1.msra.mxu0 0.0
  %1238 = vmatprep.subr.mxu0 0.0
  %1239 = vmatpush1.msra.mxu0 0.0
  %1240 = vmatprep.subr.mxu0 0.0
  %1241 = vmatpush1.msra.mxu0 0.0
  %1242 = vmatprep.subr.mxu0 0.0
  %1243 = vmatpush1.msra.mxu0 0.0
  %1244 = vmatprep.subr.mxu0 0.0
  %1245 = vmatpush1.msra.mxu0 0.0
  %1246 = vmatprep.subr.mxu0 0.0
  %1247 = vmatpush1.msra.mxu0 0.0
  %1248 = vmatprep.subr.mxu0 0.0
  %1249 = vmatpush1.msra.mxu0 0.0
  %1250 = vmatprep.subr.mxu0 0.0
  %1251 = vmatpush1.msra.mxu0 0.0
  %1252 = vmatprep.subr.mxu0 0.0
  %1253 = vmatpush1.msra.mxu0 0.0
  %1254 = vmatprep.subr.mxu0 0.0
  %1255 = vmatpush1.msra.mxu0 0.0
  %1256 = vmatprep.subr.mxu0 0.0
  %1257 = vmatpush1.msra.mxu0 0.0
  %1258 = vmatprep.subr.mxu0 0.0
  %1259 = vmatpush1.msra.mxu0 0.0
  %1260 = vmatprep.subr.mxu0 0.0
  %1261 = vmatpush1.msra.mxu0 0.0
  %1262 = vmatprep.subr.mxu0 0.0
  %1263 = vmatpush1.msra.mxu0 0.0
  %1264 = vmatprep.subr.mxu0 0.0
  %1265 = vmatpush1.msra.mxu0 0.0
  %1266 = vmatprep.subr.mxu0 0.0
  %1267 = vmatpush1.msra.mxu0 0.0
  %1268 = vmatprep.mubr.f32.mxu0 0.0
  %1269 = vmatmul.mubr.f32.gmra.mrb[0].mxu0 %v1202
  %v1270 = vpop.f32.mrb[0].mxu0
  %v1271 = vadd.f32 %v1199, %v1270
  %v1272 = vpop.f32.mrb[0].mxu0
  %1273 = vdwg.mxu0
  %1274 = vst [vmem:[%s2] sm:$0xf] %v1271
  %1276 = vrot.lane.b32.xlu0 %v1189, 120
  %v1277 = vpop.permute.xlu0 %1276
  %vm1279 = vcmask 64516
  %v1280 = vsel %vm1279, %v1277, 0.0
  %1281 = vadd.xlane.f32.xlu0 %v1280
  %v1282 = vpop.xlane.xlu0 %1281
  %v1283 = vrcp.pop %v1282
  %v1284 = vmul.f32 %v1189, %v1283
  %v1286 = vrot.slane %v1284, 4
  %1287 = vrot.lane.b32.xlu0 %v1286, 120
  %v1288 = vpop.permute.xlu0 %1287
  %v1289 = vsel %vm1200, %v1288, 0
  %1291 = vmatprep.subr.mxu0 0.0
  %1292 = vmatpush1.msra.mxu0 %v1089
  %1293 = vmatprep.subr.mxu0 0.0
  %1294 = vmatpush1.msra.mxu0 0.0
  %1295 = vmatprep.subr.mxu0 0.0
  %1296 = vmatpush1.msra.mxu0 0.0
  %1297 = vmatprep.subr.mxu0 0.0
  %1298 = vmatpush1.msra.mxu0 0.0
  %1299 = vmatprep.subr.mxu0 0.0
  %1300 = vmatpush1.msra.mxu0 0.0
  %1301 = vmatprep.subr.mxu0 0.0
  %1302 = vmatpush1.msra.mxu0 0.0
  %1303 = vmatprep.subr.mxu0 0.0
  %1304 = vmatpush1.msra.mxu0 0.0
  %1305 = vmatprep.subr.mxu0 0.0
  %1306 = vmatpush1.msra.mxu0 0.0
  %1307 = vmatprep.subr.mxu0 0.0
  %1308 = vmatpush1.msra.mxu0 0.0
  %1309 = vmatprep.subr.mxu0 0.0
  %1310 = vmatpush1.msra.mxu0 0.0
  %1311 = vmatprep.subr.mxu0 0.0
  %1312 = vmatpush1.msra.mxu0 0.0
  %1313 = vmatprep.subr.mxu0 0.0
  %1314 = vmatpush1.msra.mxu0 0.0
  %1315 = vmatprep.subr.mxu0 0.0
  %1316 = vmatpush1.msra.mxu0 0.0
  %1317 = vmatprep.subr.mxu0 0.0
  %1318 = vmatpush1.msra.mxu0 0.0
  %1319 = vmatprep.subr.mxu0 0.0
  %1320 = vmatpush1.msra.mxu0 0.0
  %1321 = vmatprep.subr.mxu0 0.0
  %1322 = vmatpush1.msra.mxu0 0.0
  %1323 = vmatprep.subr.mxu0 0.0
  %1324 = vmatpush1.msra.mxu0 0.0
  %1325 = vmatprep.subr.mxu0 0.0
  %1326 = vmatpush1.msra.mxu0 0.0
  %1327 = vmatprep.subr.mxu0 0.0
  %1328 = vmatpush1.msra.mxu0 0.0
  %1329 = vmatprep.subr.mxu0 0.0
  %1330 = vmatpush1.msra.mxu0 0.0
  %1331 = vmatprep.subr.mxu0 0.0
  %1332 = vmatpush1.msra.mxu0 0.0
  %1333 = vmatprep.subr.mxu0 0.0
  %1334 = vmatpush1.msra.mxu0 0.0
  %1335 = vmatprep.subr.mxu0 0.0
  %1336 = vmatpush1.msra.mxu0 0.0
  %1337 = vmatprep.subr.mxu0 0.0
  %1338 = vmatpush1.msra.mxu0 0.0
  %1339 = vmatprep.subr.mxu0 0.0
  %1340 = vmatpush1.msra.mxu0 0.0
  %1341 = vmatprep.subr.mxu0 0.0
  %1342 = vmatpush1.msra.mxu0 0.0
  %1343 = vmatprep.subr.mxu0 0.0
  %1344 = vmatpush1.msra.mxu0 0.0
  %1345 = vmatprep.subr.mxu0 0.0
  %1346 = vmatpush1.msra.mxu0 0.0
  %1347 = vmatprep.subr.mxu0 0.0
  %1348 = vmatpush1.msra.mxu0 0.0
  %1349 = vmatprep.subr.mxu0 0.0
  %1350 = vmatpush1.msra.mxu0 0.0
  %1351 = vmatprep.subr.mxu0 0.0
  %1352 = vmatpush1.msra.mxu0 0.0
  %1353 = vmatprep.subr.mxu0 0.0
  %1354 = vmatpush1.msra.mxu0 0.0
  %1355 = vmatprep.mubr.f32.mxu0 0.0
  %1356 = vmatmul.mubr.f32.gmra.mrb[0].mxu0 %v1289
  %v1357 = vpop.f32.mrb[0].mxu0
  %v1358 = vadd.f32 %v1199, %v1357
  %v1359 = vpop.f32.mrb[0].mxu0
  %1360 = vdwg.mxu0
  %1361 = vst [vmem:[%s2 + $0x4] sm:$0xf] %v1358
  // Predicated region
  $region10: #{forward.1} parent=0 // pred_check
    _
  $region11: #{forward.1} parent=0 // pred_check_branch
    %1363 = sbr.rel (0) target = $region13
  $region12: #{forward.1} parent=0 // pred_region
    _
  $region13: #{forward.1} parent=0 // pred_fallthru
    _
  // Predicated region
  $region14: #{forward.1} parent=0 // pred_check
    _
  $region15: #{forward.1} parent=0 // pred_check_branch
    %1365 = sbr.rel (0) target = $region17
  $region16: #{forward.1} parent=0 // pred_region
    _
  $region17: #{forward.1} parent=0 // pred_fallthru
    _

</llo_original>
